<compile_context>
chip_gen: v6e
topology: v6e:2x2x1
jax: 0.10.0
libtpu: 0.0.40
codegen_flags: <defaults>
</compile_context>

<pallas_src>
from functools import partial

import numpy as np
import jax
import jax.numpy as jnp
from jax.experimental import pallas as pl
from jax.experimental.pallas import tpu as pltpu

DPAD = 64     # padded width for every MLP dim (latent=32, hidden=32, out=7 all fit)
KPAD = 32     # padded im2col K (9 * Cin = 27 -> 32); was 128 (79% zeros in HBM)


# ---------------------------------------------------------------------------
# Fused kernel (one grid step = one batch sample):
#
#   acc    = relu(patches_b @ conv_w + conv_b)           # (HW, Cf)    f32
#   pooled = (1/HW row) @ acc                            # (1, Cf)     MXU, not VALU
#   feats  = pooled @ latent_w + latent_b                # (1, DPAD)   zero-padded
#   pre    = relu(fcK(... relu(fc0(feats)) ...))         # (1, DPAD)   real in [:7]
#   diff   = pre - measurement                           # (1, DPAD)
#   post   = relu(fcK'(... relu(fc0'([feats, diff])) ...))
#   out    = concat([pre, post], axis=1)                 # (1, 2*DPAD) lane-dense
#
# The post branch's input concat is folded into a split of its first weight
# (feats part + diff part) so the kernel never concatenates activations.
# ---------------------------------------------------------------------------
def make_fused_kernel(hw, n_pre, n_post):
    inv_hw = 1.0 / float(hw)

    def kernel(patch_ref, cw_ref, cb_ref, lw_ref, lb_ref, meas_ref,
               wpk_ref, bpk_ref, out_ref):
        # --- feature stand-in: im2col GEMM (bf16 x bf16 -> f32) + bias + ReLU
        acc = jnp.dot(patch_ref[...], cw_ref[...],
                      preferred_element_type=jnp.float32)           # (HW, Cf)
        acc = jnp.maximum(acc + cb_ref[...], 0.0)

        # --- global average pool on the MXU: constant (1, HW) row of 1/HW.
        pool_row = jnp.full((1, hw), inv_hw, dtype=jnp.float32)
        pooled = jnp.dot(pool_row, acc,
                         preferred_element_type=jnp.float32)        # (1, Cf)

        feats = (jnp.dot(pooled, lw_ref[...],
                         preferred_element_type=jnp.float32)
                 + lb_ref[...])                                     # (1, DPAD)

        b_all = bpk_ref[...]                                        # (n_pre+n_post, DPAD)

        # --- pre-measurement branch (ReLU on every layer, incl. last — per spec)
        x = feats
        for i in range(n_pre):
            x = jnp.maximum(
                jnp.dot(x, wpk_ref[i], preferred_element_type=jnp.float32)
                + b_all[i:i + 1, :], 0.0)
        pre_out = x                                                 # (1, DPAD)

        diff = pre_out - meas_ref[0]                                # (1, DPAD)

        # --- post-measurement branch; concat folded into split first weight
        y = jnp.maximum(
            jnp.dot(feats, wpk_ref[n_pre],
                    preferred_element_type=jnp.float32)
            + jnp.dot(diff, wpk_ref[n_pre + 1],
                      preferred_element_type=jnp.float32)
            + b_all[n_pre:n_pre + 1, :], 0.0)
        for i in range(1, n_post):
            y = jnp.maximum(
                jnp.dot(y, wpk_ref[n_pre + 1 + i],
                        preferred_element_type=jnp.float32)
                + b_all[n_pre + i:n_pre + i + 1, :], 0.0)

        # --- single lane-dense 128-wide store of both branches
        out_ref[0] = jnp.concatenate([pre_out, y], axis=1).astype(out_ref.dtype)

    return kernel


# ---------------------------------------------------------------------------
# Parameter init (deterministic).  Linear weights are stored (in_dim, out_dim),
# i.e. the transpose of torch.nn.Linear's (out, in).
# ---------------------------------------------------------------------------
def init_params(key, cin=3, cf=128, latent=32,
                hidden_pre=(32,), hidden_post=(32,)):
    def dense(k, din, dout, scale=0.1):
        kw, kb = jax.random.split(k)
        w = (scale * jax.random.normal(kw, (din, dout))).astype(jnp.float32)
        b = (scale * jax.random.normal(kb, (dout,))).astype(jnp.float32)
        return w, b

    n_keys = 3 + (len(hidden_pre) + 1) + (len(hidden_post) + 1)
    keys = jax.random.split(key, n_keys)
    ki = iter(keys)

    params = {}
    params["conv_w"] = (0.1 * jax.random.normal(next(ki), (3, 3, cin, cf))
                        ).astype(jnp.float32)
    params["conv_b"] = (0.1 * jax.random.normal(next(ki), (cf,))
                        ).astype(jnp.float32)
    params["latent_w"], params["latent_b"] = dense(next(ki), cf, latent)

    pre_dims = [latent] + list(hidden_pre) + [7]
    params["pre_w"], params["pre_b"] = [], []
    for din, dout in zip(pre_dims[:-1], pre_dims[1:]):
        w, b = dense(next(ki), din, dout)
        params["pre_w"].append(w)
        params["pre_b"].append(b)

    post_dims = [latent + 7] + list(hidden_post) + [7]
    params["post_w"], params["post_b"] = [], []
    for din, dout in zip(post_dims[:-1], post_dims[1:]):
        w, b = dense(next(ki), din, dout)
        params["post_w"].append(w)
        params["post_b"].append(b)
    return params


# ---------------------------------------------------------------------------
# One-time parameter packing: zero-pad every MLP weight to (DPAD, DPAD) and
# every bias to (1, DPAD); the post branch's first weight is split into a
# feats part and a diff part.  Conv weight is flattened to im2col layout,
# K-padded to KPAD and cast to bf16 (f32 accumulation in-kernel).
# ---------------------------------------------------------------------------
def _pad2(a, rows, cols):
    return jnp.pad(a, ((0, rows - a.shape[0]), (0, cols - a.shape[1])))


def pack_params(params, kpad=KPAD, dpad=DPAD):
    cin, cf = params["conv_w"].shape[2], params["conv_w"].shape[3]
    latent = params["latent_w"].shape[1]
    assert 9 * cin <= kpad
    assert max([latent, 7] + [w.shape[1] for w in params["pre_w"]]
               + [w.shape[1] for w in params["post_w"]]) <= dpad

    cw_flat = _pad2(params["conv_w"].reshape(9 * cin, cf), kpad, cf)
    cb = params["conv_b"].reshape(1, cf)
    lw = _pad2(params["latent_w"], cf, dpad)
    lb = _pad2(params["latent_b"].reshape(1, -1), 1, dpad)

    w_tiles, b_rows = [], []
    for w, b in zip(params["pre_w"], params["pre_b"]):
        w_tiles.append(_pad2(w, dpad, dpad))
        b_rows.append(_pad2(b.reshape(1, -1), 1, dpad))
    w0, b0 = params["post_w"][0], params["post_b"][0]
    w_tiles.append(_pad2(w0[:latent, :], dpad, dpad))   # feats part
    w_tiles.append(_pad2(w0[latent:, :], dpad, dpad))   # diff part
    b_rows.append(_pad2(b0.reshape(1, -1), 1, dpad))
    for w, b in zip(params["post_w"][1:], params["post_b"][1:]):
        w_tiles.append(_pad2(w, dpad, dpad))
        b_rows.append(_pad2(b.reshape(1, -1), 1, dpad))

    return {
        "conv_w": cw_flat.astype(jnp.bfloat16),    # (KPAD, Cf)  bf16 GEMM operand
        "conv_b": cb,                              # (1, Cf)     f32
        "latent_w": lw,                            # (Cf, DPAD)  f32
        "latent_b": lb,                            # (1, DPAD)   f32
        "w_pack": jnp.stack(w_tiles, axis=0),      # (n_pre+n_post+1, DPAD, DPAD) f32
        "b_pack": jnp.concatenate(b_rows, axis=0)  # (n_pre+n_post, DPAD)         f32
    }


def _nbytes(a):
    return int(np.prod(a.shape)) * jnp.dtype(a.dtype).itemsize


# ---------------------------------------------------------------------------
# Wrapper: layout change, SAME padding, wrapper-side im2col (toy shape only),
# single pallas_call with a batch-parallel grid.
# ---------------------------------------------------------------------------
@partial(jax.jit, static_argnames=("n_pre", "n_post"))
def naive_eef_estimator_forward(img_nchw, depth_nchw, self_measurement, packed,
                                *, n_pre, n_post):
    # depth mirrors the PyTorch signature but (like the reference forward)
    # is never used.
    del depth_nchw

    img = jnp.transpose(img_nchw, (0, 2, 3, 1)).astype(jnp.float32)  # NCHW->NHWC
    img = jnp.pad(img, ((0, 0), (1, 1), (1, 1), (0, 0)))             # SAME pad
    n, hp, wp, cin = img.shape
    h, w = hp - 2, wp - 2
    hw = h * w
    assert hw % 8 == 0, "toy wrapper assumes H*W multiple of 8"

    kpad, cf = packed["conv_w"].shape
    dpad = packed["b_pack"].shape[1]
    n_w = packed["w_pack"].shape[0]
    n_b = packed["b_pack"].shape[0]

    # im2col in XLA: (N, H, W, 9*Cin) -> (N*H*W, KPAD), zero-padded lanes, bf16.
    # TODO(synk): at real image sizes do this gather inside the kernel from an
    #             NHWC slab (wrapper-side im2col inflates HBM traffic ~9x).
    taps = [img[:, kh:kh + h, kw:kw + w, :]
            for kh in range(3) for kw in range(3)]
    patches = jnp.concatenate(taps, axis=-1).reshape(n * hw, 9 * cin)
    patches = jnp.pad(patches, ((0, 0), (0, kpad - 9 * cin))
                      ).astype(jnp.bfloat16)

    meas = jnp.pad(self_measurement.astype(jnp.float32),
                   ((0, 0), (0, dpad - self_measurement.shape[1])))
    meas = meas.reshape(n, 1, dpad)   # (N,1,DPAD): block last-two dims == full dims

    inputs = (patches, packed["conv_w"], packed["conv_b"],
              packed["latent_w"], packed["latent_b"], meas,
              packed["w_pack"], packed["b_pack"])

    flops = (2 * n * hw * kpad * cf          # conv GEMM
             + 2 * n * hw * cf               # MXU global-average-pool
             + 2 * n * cf * dpad             # latent projection
             + 2 * n * n_w * dpad * dpad)    # MLP dots (incl. split post fc0)
    bytes_accessed = sum(_nbytes(a) for a in inputs) + n * 2 * dpad * 4

    out = pl.pallas_call(
        make_fused_kernel(hw, n_pre, n_post),
        out_shape=jax.ShapeDtypeStruct((n, 1, 2 * dpad), jnp.float32),
        grid=(n,),
        in_specs=[
            pl.BlockSpec((hw, kpad), lambda i: (i, 0)),            # patches (per sample)
            pl.BlockSpec((kpad, cf), lambda i: (0, 0)),            # conv_w  (resident)
            pl.BlockSpec((1, cf), lambda i: (0, 0)),               # conv_b
            pl.BlockSpec((cf, dpad), lambda i: (0, 0)),            # latent_w
            pl.BlockSpec((1, dpad), lambda i: (0, 0)),             # latent_b
            pl.BlockSpec((1, 1, dpad), lambda i: (i, 0, 0)),       # measurement
            pl.BlockSpec((n_w, dpad, dpad), lambda i: (0, 0, 0)),  # w_pack
            pl.BlockSpec((n_b, dpad), lambda i: (0, 0)),           # b_pack
        ],
        out_specs=pl.BlockSpec((1, 1, 2 * dpad), lambda i: (i, 0, 0)),
        compiler_params=pltpu.CompilerParams(
            dimension_semantics=("parallel",)),                    # v7x: 2 TCs
        cost_estimate=pl.CostEstimate(flops=flops, transcendentals=0,
                                      bytes_accessed=bytes_accessed),
    )(*inputs)

    pre_out = out[:, 0, :7]
    post_out = out[:, 0, dpad:dpad + 7]
    return pre_out, post_out


# ---------------------------------------------------------------------------
# Pure-JAX reference (same math, unpadded params, same bf16 quantization of
# the conv-GEMM operands) for correctness checking.
# ---------------------------------------------------------------------------
def reference_forward(img_nchw, depth_nchw, meas, params):
    del depth_nchw
    img = jnp.transpose(img_nchw, (0, 2, 3, 1)).astype(jnp.float32)
    img = img.astype(jnp.bfloat16).astype(jnp.float32)   # match kernel quantization
    img = jnp.pad(img, ((0, 0), (1, 1), (1, 1), (0, 0)))
    n, hp, wp, cin = img.shape
    h, w = hp - 2, wp - 2
    cw = params["conv_w"].astype(jnp.bfloat16).astype(jnp.float32)
    cf = cw.shape[-1]
    acc = jnp.zeros((n, h, w, cf), jnp.float32)
    for kh in range(3):
        for kw in range(3):
            acc = acc + jnp.einsum("nhwc,cf->nhwf",
                                   img[:, kh:kh + h, kw:kw + w, :], cw[kh, kw])
    acc = jax.nn.relu(acc + params["conv_b"])
    pooled = acc.mean(axis=(1, 2))
    feats = pooled @ params["latent_w"] + params["latent_b"]

    x = feats
    for w_, b_ in zip(params["pre_w"], params["pre_b"]):
        x = jax.nn.relu(x @ w_ + b_)
    pre_out = x
    diff = pre_out - meas
    y = jnp.concatenate([feats, diff], axis=1)
    for w_, b_ in zip(params["post_w"], params["post_b"]):
        y = jax.nn.relu(y @ w_ + b_)
    return pre_out, y


if __name__ == "__main__":
    key = jax.random.PRNGKey(0)
    k_img, k_depth, k_meas, k_params = jax.random.split(key, 4)

    N, C, H, W = 2, 3, 16, 16
    img = jax.random.normal(k_img, (N, C, H, W), jnp.float32)
    depth = jax.random.normal(k_depth, (N, 1, H, W), jnp.float32)
    self_measurement = jax.random.normal(k_meas, (N, 7), jnp.float32)

    params = init_params(k_params, cin=C, cf=128, latent=32,
                         hidden_pre=(32,), hidden_post=(32,))
    packed = pack_params(params)
    n_pre, n_post = len(params["pre_w"]), len(params["post_w"])

    pre_out, post_out = naive_eef_estimator_forward(
        img, depth, self_measurement, packed, n_pre=n_pre, n_post=n_post)
    jax.block_until_ready((pre_out, post_out))

    ref_pre, ref_post = reference_forward(img, depth, self_measurement, params)
    assert pre_out.shape == (N, 7) and post_out.shape == (N, 7)
    np.testing.assert_allclose(np.asarray(pre_out), np.asarray(ref_pre),
                               rtol=1e-3, atol=1e-3)
    np.testing.assert_allclose(np.asarray(post_out), np.asarray(ref_post),
                               rtol=1e-3, atol=1e-3)
    print("KERNEL_OK")
</pallas_src>

<mosaic_0001>
module attributes {stable_mosaic.version = 11 : i64} {
  func.func @kernel(%arg0: i32, %arg1: memref<256x32xbf16, #tpu.memory_space<vmem>>, %arg2: memref<32x128xbf16, #tpu.memory_space<vmem>>, %arg3: memref<1x128xf32, #tpu.memory_space<vmem>>, %arg4: memref<128x64xf32, #tpu.memory_space<vmem>>, %arg5: memref<1x64xf32, #tpu.memory_space<vmem>>, %arg6: memref<1x1x64xf32, #tpu.memory_space<vmem>>, %arg7: memref<5x64x64xf32, #tpu.memory_space<vmem>>, %arg8: memref<4x64xf32, #tpu.memory_space<vmem>>, %arg9: memref<1x1x128xf32, #tpu.memory_space<vmem>>) attributes {dimension_semantics = [#tpu.dimension_semantics<parallel>], iteration_bounds = array<i64: 2>, scalar_prefetch = 0 : i64, scratch_operands = 0 : i64, tpu.core_type = #tpu.core_type<tc>, window_params = [{transform_indices = @transform_0, window_bounds = array<i64: 256, 32>}, {pipeline_mode = #tpu.pipeline_mode<synchronous>, transform_indices = @transform_1, window_bounds = array<i64: 32, 128>}, {pipeline_mode = #tpu.pipeline_mode<synchronous>, transform_indices = @transform_2, window_bounds = array<i64: 1, 128>}, {pipeline_mode = #tpu.pipeline_mode<synchronous>, transform_indices = @transform_3, window_bounds = array<i64: 128, 64>}, {pipeline_mode = #tpu.pipeline_mode<synchronous>, transform_indices = @transform_4, window_bounds = array<i64: 1, 64>}, {transform_indices = @transform_5, window_bounds = array<i64: 1, 1, 64>}, {pipeline_mode = #tpu.pipeline_mode<synchronous>, transform_indices = @transform_6, window_bounds = array<i64: 5, 64, 64>}, {pipeline_mode = #tpu.pipeline_mode<synchronous>, transform_indices = @transform_7, window_bounds = array<i64: 4, 64>}, {transform_indices = @transform_8, window_bounds = array<i64: 1, 1, 128>}]} {
    %c0 = arith.constant 0 : index
    %c0_0 = arith.constant 0 : index
    %0 = vector.load %arg1[%c0, %c0_0] : memref<256x32xbf16, #tpu.memory_space<vmem>>, vector<256x32xbf16>
    %c0_1 = arith.constant 0 : index
    %c0_2 = arith.constant 0 : index
    %1 = vector.load %arg2[%c0_1, %c0_2] : memref<32x128xbf16, #tpu.memory_space<vmem>>, vector<32x128xbf16>
    %cst = arith.constant dense<0.000000e+00> : vector<256x128xf32>
    %2 = tpu.matmul %0, %1, %cst {dimension_numbers = #tpu.dot_dimension_numbers<[1], [0], [0], [1], [0, 0, 1, 1], [], []>} : vector<256x32xbf16>, vector<32x128xbf16>, vector<256x128xf32> -> vector<256x128xf32>
    %c0_3 = arith.constant 0 : index
    %c0_4 = arith.constant 0 : index
    %3 = vector.load %arg3[%c0_3, %c0_4] : memref<1x128xf32, #tpu.memory_space<vmem>>, vector<1x128xf32>
    %4 = vector.broadcast %3 : vector<1x128xf32> to vector<256x128xf32>
    %5 = arith.addf %2, %4 : vector<256x128xf32>
    %cst_5 = arith.constant 0.000000e+00 : f32
    %6 = vector.broadcast %cst_5 : f32 to vector<256x128xf32>
    %7 = arith.maximumf %5, %6 : vector<256x128xf32>
    %cst_6 = arith.constant 3.906250e-03 : f32
    %8 = vector.broadcast %cst_6 : f32 to vector<1x256xf32>
    %cst_7 = arith.constant dense<0.000000e+00> : vector<1x128xf32>
    %9 = tpu.matmul %8, %7, %cst_7 {dimension_numbers = #tpu.dot_dimension_numbers<[1], [0], [0], [1], [0, 0, 1, 1], [], []>} : vector<1x256xf32>, vector<256x128xf32>, vector<1x128xf32> -> vector<1x128xf32>
    %c0_8 = arith.constant 0 : index
    %c0_9 = arith.constant 0 : index
    %10 = vector.load %arg4[%c0_8, %c0_9] : memref<128x64xf32, #tpu.memory_space<vmem>>, vector<128x64xf32>
    %cst_10 = arith.constant dense<0.000000e+00> : vector<1x64xf32>
    %11 = tpu.matmul %9, %10, %cst_10 {dimension_numbers = #tpu.dot_dimension_numbers<[1], [0], [0], [1], [0, 0, 1, 1], [], []>} : vector<1x128xf32>, vector<128x64xf32>, vector<1x64xf32> -> vector<1x64xf32>
    %c0_11 = arith.constant 0 : index
    %c0_12 = arith.constant 0 : index
    %12 = vector.load %arg5[%c0_11, %c0_12] : memref<1x64xf32, #tpu.memory_space<vmem>>, vector<1x64xf32>
    %13 = arith.addf %11, %12 : vector<1x64xf32>
    %c0_13 = arith.constant 0 : index
    %c0_14 = arith.constant 0 : index
    %14 = vector.load %arg8[%c0_13, %c0_14] : memref<4x64xf32, #tpu.memory_space<vmem>>, vector<4x64xf32>
    %c0_15 = arith.constant 0 : index
    %c0_16 = arith.constant 0 : index
    %c0_17 = arith.constant 0 : index
    %15 = vector.load %arg7[%c0_15, %c0_16, %c0_17] : memref<5x64x64xf32, #tpu.memory_space<vmem>>, vector<1x64x64xf32>
    %16 = vector.shape_cast %15 : vector<1x64x64xf32> to vector<64x64xf32>
    %cst_18 = arith.constant dense<0.000000e+00> : vector<1x64xf32>
    %17 = tpu.matmul %13, %16, %cst_18 {dimension_numbers = #tpu.dot_dimension_numbers<[1], [0], [0], [1], [0, 0, 1, 1], [], []>} : vector<1x64xf32>, vector<64x64xf32>, vector<1x64xf32> -> vector<1x64xf32>
    %18 = vector.extract_strided_slice %14 {offsets = [0, 0], sizes = [1, 64], strides = [1, 1]} : vector<4x64xf32> to vector<1x64xf32>
    %19 = arith.addf %17, %18 : vector<1x64xf32>
    %cst_19 = arith.constant 0.000000e+00 : f32
    %20 = vector.broadcast %cst_19 : f32 to vector<1x64xf32>
    %21 = arith.maximumf %19, %20 : vector<1x64xf32>
    %c1 = arith.constant 1 : index
    %c0_20 = arith.constant 0 : index
    %c0_21 = arith.constant 0 : index
    %22 = vector.load %arg7[%c1, %c0_20, %c0_21] : memref<5x64x64xf32, #tpu.memory_space<vmem>>, vector<1x64x64xf32>
    %23 = vector.shape_cast %22 : vector<1x64x64xf32> to vector<64x64xf32>
    %cst_22 = arith.constant dense<0.000000e+00> : vector<1x64xf32>
    %24 = tpu.matmul %21, %23, %cst_22 {dimension_numbers = #tpu.dot_dimension_numbers<[1], [0], [0], [1], [0, 0, 1, 1], [], []>} : vector<1x64xf32>, vector<64x64xf32>, vector<1x64xf32> -> vector<1x64xf32>
    %25 = vector.extract_strided_slice %14 {offsets = [1, 0], sizes = [1, 64], strides = [1, 1]} : vector<4x64xf32> to vector<1x64xf32>
    %26 = arith.addf %24, %25 : vector<1x64xf32>
    %cst_23 = arith.constant 0.000000e+00 : f32
    %27 = vector.broadcast %cst_23 : f32 to vector<1x64xf32>
    %28 = arith.maximumf %26, %27 : vector<1x64xf32>
    %c0_24 = arith.constant 0 : index
    %c0_25 = arith.constant 0 : index
    %c0_26 = arith.constant 0 : index
    %29 = vector.load %arg6[%c0_24, %c0_25, %c0_26] : memref<1x1x64xf32, #tpu.memory_space<vmem>>, vector<1x1x64xf32>
    %30 = vector.shape_cast %29 : vector<1x1x64xf32> to vector<1x64xf32>
    %31 = arith.subf %28, %30 : vector<1x64xf32>
    %c2 = arith.constant 2 : index
    %c0_27 = arith.constant 0 : index
    %c0_28 = arith.constant 0 : index
    %32 = vector.load %arg7[%c2, %c0_27, %c0_28] : memref<5x64x64xf32, #tpu.memory_space<vmem>>, vector<1x64x64xf32>
    %33 = vector.shape_cast %32 : vector<1x64x64xf32> to vector<64x64xf32>
    %cst_29 = arith.constant dense<0.000000e+00> : vector<1x64xf32>
    %34 = tpu.matmul %13, %33, %cst_29 {dimension_numbers = #tpu.dot_dimension_numbers<[1], [0], [0], [1], [0, 0, 1, 1], [], []>} : vector<1x64xf32>, vector<64x64xf32>, vector<1x64xf32> -> vector<1x64xf32>
    %c3 = arith.constant 3 : index
    %c0_30 = arith.constant 0 : index
    %c0_31 = arith.constant 0 : index
    %35 = vector.load %arg7[%c3, %c0_30, %c0_31] : memref<5x64x64xf32, #tpu.memory_space<vmem>>, vector<1x64x64xf32>
    %36 = vector.shape_cast %35 : vector<1x64x64xf32> to vector<64x64xf32>
    %cst_32 = arith.constant dense<0.000000e+00> : vector<1x64xf32>
    %37 = tpu.matmul %31, %36, %cst_32 {dimension_numbers = #tpu.dot_dimension_numbers<[1], [0], [0], [1], [0, 0, 1, 1], [], []>} : vector<1x64xf32>, vector<64x64xf32>, vector<1x64xf32> -> vector<1x64xf32>
    %38 = arith.addf %34, %37 : vector<1x64xf32>
    %39 = vector.extract_strided_slice %14 {offsets = [2, 0], sizes = [1, 64], strides = [1, 1]} : vector<4x64xf32> to vector<1x64xf32>
    %40 = arith.addf %38, %39 : vector<1x64xf32>
    %cst_33 = arith.constant 0.000000e+00 : f32
    %41 = vector.broadcast %cst_33 : f32 to vector<1x64xf32>
    %42 = arith.maximumf %40, %41 : vector<1x64xf32>
    %c4 = arith.constant 4 : index
    %c0_34 = arith.constant 0 : index
    %c0_35 = arith.constant 0 : index
    %43 = vector.load %arg7[%c4, %c0_34, %c0_35] : memref<5x64x64xf32, #tpu.memory_space<vmem>>, vector<1x64x64xf32>
    %44 = vector.shape_cast %43 : vector<1x64x64xf32> to vector<64x64xf32>
    %cst_36 = arith.constant dense<0.000000e+00> : vector<1x64xf32>
    %45 = tpu.matmul %42, %44, %cst_36 {dimension_numbers = #tpu.dot_dimension_numbers<[1], [0], [0], [1], [0, 0, 1, 1], [], []>} : vector<1x64xf32>, vector<64x64xf32>, vector<1x64xf32> -> vector<1x64xf32>
    %46 = vector.extract_strided_slice %14 {offsets = [3, 0], sizes = [1, 64], strides = [1, 1]} : vector<4x64xf32> to vector<1x64xf32>
    %47 = arith.addf %45, %46 : vector<1x64xf32>
    %cst_37 = arith.constant 0.000000e+00 : f32
    %48 = vector.broadcast %cst_37 : f32 to vector<1x64xf32>
    %49 = arith.maximumf %47, %48 : vector<1x64xf32>
    %50 = tpu.concatenate %28, %49 in 1 : vector<1x64xf32>, vector<1x64xf32> -> vector<1x128xf32>
    %c0_38 = arith.constant 0 : index
    %c0_39 = arith.constant 0 : index
    %c0_40 = arith.constant 0 : index
    %51 = vector.load %arg9[%c0_38, %c0_39, %c0_40] : memref<1x1x128xf32, #tpu.memory_space<vmem>>, vector<1x1x128xf32>
    %52 = vector.shape_cast %51 : vector<1x1x128xf32> to vector<1x128xf32>
    %53 = vector.shape_cast %50 : vector<1x128xf32> to vector<1x1x128xf32>
    tpu.vector_store %arg9[%c0_38, %c0_39, %c0_40], %53 {strides = array<i32>} : memref<1x1x128xf32, #tpu.memory_space<vmem>>, vector<1x1x128xf32>,
    return
  }
  func.func @transform_0(%arg0: i32) -> (i32, i32) {
    %c0_i32 = arith.constant 0 : i32
    %c0_i32_0 = arith.constant 0 : i32
    return %arg0, %c0_i32 : i32, i32
  }
  func.func @transform_1(%arg0: i32) -> (i32, i32) {
    %c0_i32 = arith.constant 0 : i32
    %c0_i32_0 = arith.constant 0 : i32
    %c0_i32_1 = arith.constant 0 : i32
    return %c0_i32, %c0_i32_0 : i32, i32
  }
  func.func @transform_2(%arg0: i32) -> (i32, i32) {
    %c0_i32 = arith.constant 0 : i32
    %c0_i32_0 = arith.constant 0 : i32
    %c0_i32_1 = arith.constant 0 : i32
    return %c0_i32, %c0_i32_0 : i32, i32
  }
  func.func @transform_3(%arg0: i32) -> (i32, i32) {
    %c0_i32 = arith.constant 0 : i32
    %c0_i32_0 = arith.constant 0 : i32
    %c0_i32_1 = arith.constant 0 : i32
    return %c0_i32, %c0_i32_0 : i32, i32
  }
  func.func @transform_4(%arg0: i32) -> (i32, i32) {
    %c0_i32 = arith.constant 0 : i32
    %c0_i32_0 = arith.constant 0 : i32
    %c0_i32_1 = arith.constant 0 : i32
    return %c0_i32, %c0_i32_0 : i32, i32
  }
  func.func @transform_5(%arg0: i32) -> (i32, i32, i32) {
    %c0_i32 = arith.constant 0 : i32
    %c0_i32_0 = arith.constant 0 : i32
    %c0_i32_1 = arith.constant 0 : i32
    return %arg0, %c0_i32, %c0_i32_0 : i32, i32, i32
  }
  func.func @transform_6(%arg0: i32) -> (i32, i32, i32) {
    %c0_i32 = arith.constant 0 : i32
    %c0_i32_0 = arith.constant 0 : i32
    %c0_i32_1 = arith.constant 0 : i32
    %c0_i32_2 = arith.constant 0 : i32
    return %c0_i32, %c0_i32_0, %c0_i32_1 : i32, i32, i32
  }
  func.func @transform_7(%arg0: i32) -> (i32, i32) {
    %c0_i32 = arith.constant 0 : i32
    %c0_i32_0 = arith.constant 0 : i32
    %c0_i32_1 = arith.constant 0 : i32
    return %c0_i32, %c0_i32_0 : i32, i32
  }
  func.func @transform_8(%arg0: i32) -> (i32, i32, i32) {
    %c0_i32 = arith.constant 0 : i32
    %c0_i32_0 = arith.constant 0 : i32
    %c0_i32_1 = arith.constant 0 : i32
    return %arg0, %c0_i32, %c0_i32_0 : i32, i32, i32
  }
}

</mosaic_0001>

<llo_original>
// kernel: naive_eef_estimator_forward.1
$region0: #{naive_eef_estimator_forward.1}
  #allocation0 [shape = 'u32[]', space=smem, size = 0x4, offset = 0x4, fixed_abs, tag = 'smem constant byte address 0x4 - core index']
  #allocation1 [shape = 'u32[144,128]{1,0:T(1,128)}', space=vmem, size = 0x12000, scoped, tag = 'internal scratch']
  %s0 = inlined_call_operand.vmem [shape: bf16[512,32], index: 0, kind: input, shape index: {}]
  %s1 = inlined_call_operand.vmem [shape: bf16[32,128], index: 1, kind: input, shape index: {}]
  %s2 = inlined_call_operand.vmem [shape: f32[1,128], index: 2, kind: input, shape index: {}]
  %s3 = inlined_call_operand.vmem [shape: f32[128,64], index: 3, kind: input, shape index: {}]
  %s4 = inlined_call_operand.vmem [shape: f32[1,64], index: 4, kind: input, shape index: {}]
  %s5 = inlined_call_operand.vmem [shape: f32[2,1,64], index: 5, kind: input, shape index: {}]
  %s6 = inlined_call_operand.vmem [shape: f32[5,64,64], index: 6, kind: input, shape index: {}]
  %s7 = inlined_call_operand.vmem [shape: f32[4,64], index: 7, kind: input, shape index: {}]
  %s8 = inlined_call_operand.vmem [shape: f32[2,1,128], index: 8, kind: output, shape index: {}]
  %s9 = sld [smem:[#allocation0]]
  $region65: #{naive_eef_estimator_forward.1} parent=0
    _
  %s11 = ssub.s32 1, %s9
  %s12 = scalar_select 0, %s11, %s9
  loop: start=0, step=1, limit=4
  $region2: #{naive_eef_estimator_forward.1} parent=0 // loop_pre_header
    _
  $region3: #{naive_eef_estimator_forward.1} parent=0 // loop_header
    %s14 = sphi 0, %s18
    %p15 = scmp.ge.s32.totalorder %s14, 4
    %s24 = sphi 0, %s26
    %s27 = sphi 0, %s24
    %s28 = sphi 0, %s27
    %s44 = sphi 0, %s28
    %s48 = sphi 0, %s48
    %s50 = sphi 0, %s48
    %s51 = sphi 0, %s50
    %s65 = sphi 0, %s51
    %s69 = sphi 0, %s69
    %s71 = sphi 0, %s69
    %s72 = sphi 0, %s71
    %s86 = sphi 0, %s72
    %s90 = sphi 0, %s90
    %s92 = sphi 0, %s90
    %s93 = sphi 0, %s92
    %s107 = sphi 0, %s93
    %s111 = sphi 0, %s111
    %s113 = sphi 0, %s111
    %s114 = sphi 0, %s113
    %s128 = sphi 0, %s114
    %s134 = sphi 0, %s136
    %s137 = sphi 0, %s134
    %s138 = sphi 0, %s137
    %s154 = sphi 0, %s138
    %s158 = sphi 0, %s158
    %s160 = sphi 0, %s158
    %s161 = sphi 0, %s160
    %s175 = sphi 0, %s161
    %s179 = sphi 0, %s179
    %s181 = sphi 0, %s179
    %s182 = sphi 0, %s181
    %s196 = sphi 0, %s182
    %s202 = sphi 0, %s204
    %s205 = sphi 0, %s202
    %s206 = sphi 0, %s205
    %s222 = sphi 0, %s206
  $region4: #{naive_eef_estimator_forward.1} parent=0 // loop_header_branch
    %17 = sbr.rel (%p15) target = $region8
  $region5: #{naive_eef_estimator_forward.1} parent=0 // loop_body
    %s19 = ssub.s32 %s14, 1
    %s20 = ssub.s32 %s14, 2
    %s21 = sadd.s32 %s14, 1
    %s22 = ssub.s32 %s14, %s21
    %p23 = scmp.eq.s32.totalorder %s22, 0
    %s25 = sadd.s32 %s24, 1
    %s26 = scalar_select %p23, %s24, %s25
    %p29 = pneg %p23
    %p30 = scmp.eq.s32.totalorder %s14, 1
    %p31 = por %p29, %p30
    %p32 = scmp.ne.s32.totalorder %s24, %s27
    %p33 = scmp.eq.s32.totalorder %s14, 0
    %p34 = por %p32, %p33
    %p35 = scmp.ne.s32.totalorder %s24, %s27
    %p36 = scmp.eq.s32.totalorder %s19, 1
    %p37 = por %p35, %p36
    %p38 = scmp.ne.s32.totalorder %s27, %s28
    %p39 = scmp.eq.s32.totalorder %s19, 0
    %p40 = por %p38, %p39
    %p41 = scmp.ne.s32.totalorder %s27, %s28
    %p42 = scmp.eq.s32.totalorder %s20, 1
    %p43 = por %p41, %p42
    %p45 = scmp.ne.s32.totalorder %s28, %s44
    %p46 = scmp.eq.s32.totalorder %s20, 0
    %p47 = por %p45, %p46
    %s49 = sadd.s32 %s48, 1
    %p52 = scmp.eq.s32.totalorder %s14, 1
    %p53 = scmp.ne.s32.totalorder %s48, %s50
    %p54 = scmp.eq.s32.totalorder %s14, 0
    %p55 = por %p53, %p54
    %p56 = scmp.ne.s32.totalorder %s48, %s50
    %p57 = scmp.eq.s32.totalorder %s19, 1
    %p58 = por %p56, %p57
    %p59 = scmp.ne.s32.totalorder %s50, %s51
    %p60 = scmp.eq.s32.totalorder %s19, 0
    %p61 = por %p59, %p60
    %p62 = scmp.ne.s32.totalorder %s50, %s51
    %p63 = scmp.eq.s32.totalorder %s20, 1
    %p64 = por %p62, %p63
    %p66 = scmp.ne.s32.totalorder %s51, %s65
    %p67 = scmp.eq.s32.totalorder %s20, 0
    %p68 = por %p66, %p67
    %s70 = sadd.s32 %s69, 1
    %p73 = scmp.eq.s32.totalorder %s14, 1
    %p74 = scmp.ne.s32.totalorder %s69, %s71
    %p75 = scmp.eq.s32.totalorder %s14, 0
    %p76 = por %p74, %p75
    %p77 = scmp.ne.s32.totalorder %s69, %s71
    %p78 = scmp.eq.s32.totalorder %s19, 1
    %p79 = por %p77, %p78
    %p80 = scmp.ne.s32.totalorder %s71, %s72
    %p81 = scmp.eq.s32.totalorder %s19, 0
    %p82 = por %p80, %p81
    %p83 = scmp.ne.s32.totalorder %s71, %s72
    %p84 = scmp.eq.s32.totalorder %s20, 1
    %p85 = por %p83, %p84
    %p87 = scmp.ne.s32.totalorder %s72, %s86
    %p88 = scmp.eq.s32.totalorder %s20, 0
    %p89 = por %p87, %p88
    %s91 = sadd.s32 %s90, 1
    %p94 = scmp.eq.s32.totalorder %s14, 1
    %p95 = scmp.ne.s32.totalorder %s90, %s92
    %p96 = scmp.eq.s32.totalorder %s14, 0
    %p97 = por %p95, %p96
    %p98 = scmp.ne.s32.totalorder %s90, %s92
    %p99 = scmp.eq.s32.totalorder %s19, 1
    %p100 = por %p98, %p99
    %p101 = scmp.ne.s32.totalorder %s92, %s93
    %p102 = scmp.eq.s32.totalorder %s19, 0
    %p103 = por %p101, %p102
    %p104 = scmp.ne.s32.totalorder %s92, %s93
    %p105 = scmp.eq.s32.totalorder %s20, 1
    %p106 = por %p104, %p105
    %p108 = scmp.ne.s32.totalorder %s93, %s107
    %p109 = scmp.eq.s32.totalorder %s20, 0
    %p110 = por %p108, %p109
    %s112 = sadd.s32 %s111, 1
    %p115 = scmp.eq.s32.totalorder %s14, 1
    %p116 = scmp.ne.s32.totalorder %s111, %s113
    %p117 = scmp.eq.s32.totalorder %s14, 0
    %p118 = por %p116, %p117
    %p119 = scmp.ne.s32.totalorder %s111, %s113
    %p120 = scmp.eq.s32.totalorder %s19, 1
    %p121 = por %p119, %p120
    %p122 = scmp.ne.s32.totalorder %s113, %s114
    %p123 = scmp.eq.s32.totalorder %s19, 0
    %p124 = por %p122, %p123
    %p125 = scmp.ne.s32.totalorder %s113, %s114
    %p126 = scmp.eq.s32.totalorder %s20, 1
    %p127 = por %p125, %p126
    %p129 = scmp.ne.s32.totalorder %s114, %s128
    %p130 = scmp.eq.s32.totalorder %s20, 0
    %p131 = por %p129, %p130
    %s132 = ssub.s32 %s14, %s21
    %p133 = scmp.eq.s32.totalorder %s132, 0
    %s135 = sadd.s32 %s134, 1
    %s136 = scalar_select %p133, %s134, %s135
    %p139 = pneg %p133
    %p140 = scmp.eq.s32.totalorder %s14, 1
    %p141 = por %p139, %p140
    %p142 = scmp.ne.s32.totalorder %s134, %s137
    %p143 = scmp.eq.s32.totalorder %s14, 0
    %p144 = por %p142, %p143
    %p145 = scmp.ne.s32.totalorder %s134, %s137
    %p146 = scmp.eq.s32.totalorder %s19, 1
    %p147 = por %p145, %p146
    %p148 = scmp.ne.s32.totalorder %s137, %s138
    %p149 = scmp.eq.s32.totalorder %s19, 0
    %p150 = por %p148, %p149
    %p151 = scmp.ne.s32.totalorder %s137, %s138
    %p152 = scmp.eq.s32.totalorder %s20, 1
    %p153 = por %p151, %p152
    %p155 = scmp.ne.s32.totalorder %s138, %s154
    %p156 = scmp.eq.s32.totalorder %s20, 0
    %p157 = por %p155, %p156
    %s159 = sadd.s32 %s158, 1
    %p162 = scmp.eq.s32.totalorder %s14, 1
    %p163 = scmp.ne.s32.totalorder %s158, %s160
    %p164 = scmp.eq.s32.totalorder %s14, 0
    %p165 = por %p163, %p164
    %p166 = scmp.ne.s32.totalorder %s158, %s160
    %p167 = scmp.eq.s32.totalorder %s19, 1
    %p168 = por %p166, %p167
    %p169 = scmp.ne.s32.totalorder %s160, %s161
    %p170 = scmp.eq.s32.totalorder %s19, 0
    %p171 = por %p169, %p170
    %p172 = scmp.ne.s32.totalorder %s160, %s161
    %p173 = scmp.eq.s32.totalorder %s20, 1
    %p174 = por %p172, %p173
    %p176 = scmp.ne.s32.totalorder %s161, %s175
    %p177 = scmp.eq.s32.totalorder %s20, 0
    %p178 = por %p176, %p177
    %s180 = sadd.s32 %s179, 1
    %p183 = scmp.eq.s32.totalorder %s14, 1
    %p184 = scmp.ne.s32.totalorder %s179, %s181
    %p185 = scmp.eq.s32.totalorder %s14, 0
    %p186 = por %p184, %p185
    %p187 = scmp.ne.s32.totalorder %s179, %s181
    %p188 = scmp.eq.s32.totalorder %s19, 1
    %p189 = por %p187, %p188
    %p190 = scmp.ne.s32.totalorder %s181, %s182
    %p191 = scmp.eq.s32.totalorder %s19, 0
    %p192 = por %p190, %p191
    %p193 = scmp.ne.s32.totalorder %s181, %s182
    %p194 = scmp.eq.s32.totalorder %s20, 1
    %p195 = por %p193, %p194
    %p197 = scmp.ne.s32.totalorder %s182, %s196
    %p198 = scmp.eq.s32.totalorder %s20, 0
    %p199 = por %p197, %p198
    %s200 = ssub.s32 %s14, %s21
    %p201 = scmp.eq.s32.totalorder %s200, 0
    %s203 = sadd.s32 %s202, 1
    %s204 = scalar_select %p201, %s202, %s203
    %p207 = pneg %p201
    %p208 = scmp.eq.s32.totalorder %s14, 1
    %p209 = por %p207, %p208
    %p210 = scmp.ne.s32.totalorder %s202, %s205
    %p211 = scmp.eq.s32.totalorder %s14, 0
    %p212 = por %p210, %p211
    %p213 = scmp.ne.s32.totalorder %s202, %s205
    %p214 = scmp.eq.s32.totalorder %s19, 1
    %p215 = por %p213, %p214
    %p216 = scmp.ne.s32.totalorder %s205, %s206
    %p217 = scmp.eq.s32.totalorder %s19, 0
    %p218 = por %p216, %p217
    %p219 = scmp.ne.s32.totalorder %s205, %s206
    %p220 = scmp.eq.s32.totalorder %s20, 1
    %p221 = por %p219, %p220
    %p223 = scmp.ne.s32.totalorder %s206, %s222
    %p224 = scmp.eq.s32.totalorder %s20, 0
    %p225 = por %p223, %p224
    %p226 = scmp.le.s32.totalorder 1, %s14
    %p227 = scmp.lt.s32.totalorder %s14, 3
    %p228 = pnand %p226, %p227
    %p229 = pneg %p228
    // Predicated region
    $region9: #{naive_eef_estimator_forward.1} parent=5 // pred_check
      _
    $region10: #{naive_eef_estimator_forward.1} parent=5 // pred_check_branch
      %231 = sbr.rel (%p228) target = $region12
    $region11: #{naive_eef_estimator_forward.1} parent=5 // pred_region
      %s232 = ssub.s32 %s14, 1
      // Predicated region
      $region13: #{naive_eef_estimator_forward.1} parent=11 // pred_check
        %p233 = pneg %p61
      $region14: #{naive_eef_estimator_forward.1} parent=11 // pred_check_branch
        %235 = sbr.rel (%p233) target = $region16
      $region15: #{naive_eef_estimator_forward.1} parent=11 // pred_region
        _
      $region16: #{naive_eef_estimator_forward.1} parent=11 // pred_fallthru
        _
      // Predicated region
      $region17: #{naive_eef_estimator_forward.1} parent=11 // pred_check
        %p236 = pneg %p82
      $region18: #{naive_eef_estimator_forward.1} parent=11 // pred_check_branch
        %238 = sbr.rel (%p236) target = $region20
      $region19: #{naive_eef_estimator_forward.1} parent=11 // pred_region
        _
      $region20: #{naive_eef_estimator_forward.1} parent=11 // pred_fallthru
        _
      // Predicated region
      $region21: #{naive_eef_estimator_forward.1} parent=11 // pred_check
        %p239 = pneg %p103
      $region22: #{naive_eef_estimator_forward.1} parent=11 // pred_check_branch
        %241 = sbr.rel (%p239) target = $region24
      $region23: #{naive_eef_estimator_forward.1} parent=11 // pred_region
        _
      $region24: #{naive_eef_estimator_forward.1} parent=11 // pred_fallthru
        _
      // Predicated region
      $region25: #{naive_eef_estimator_forward.1} parent=11 // pred_check
        %p242 = pneg %p124
      $region26: #{naive_eef_estimator_forward.1} parent=11 // pred_check_branch
        %244 = sbr.rel (%p242) target = $region28
      $region27: #{naive_eef_estimator_forward.1} parent=11 // pred_region
        _
      $region28: #{naive_eef_estimator_forward.1} parent=11 // pred_fallthru
        _
      // Predicated region
      $region29: #{naive_eef_estimator_forward.1} parent=11 // pred_check
        %p245 = pneg %p171
      $region30: #{naive_eef_estimator_forward.1} parent=11 // pred_check_branch
        %247 = sbr.rel (%p245) target = $region32
      $region31: #{naive_eef_estimator_forward.1} parent=11 // pred_region
        _
      $region32: #{naive_eef_estimator_forward.1} parent=11 // pred_fallthru
        _
      // Predicated region
      $region33: #{naive_eef_estimator_forward.1} parent=11 // pred_check
        %p248 = pneg %p192
      $region34: #{naive_eef_estimator_forward.1} parent=11 // pred_check_branch
        %250 = sbr.rel (%p248) target = $region36
      $region35: #{naive_eef_estimator_forward.1} parent=11 // pred_region
        _
      $region36: #{naive_eef_estimator_forward.1} parent=11 // pred_fallthru
        _
    $region12: #{naive_eef_estimator_forward.1} parent=5 // pred_fallthru
      _
    %p251 = scmp.lt.s32.totalorder %s14, 2
    // Predicated region
    $region37: #{naive_eef_estimator_forward.1} parent=5 // pred_check
      %p252 = pneg %p251
    $region38: #{naive_eef_estimator_forward.1} parent=5 // pred_check_branch
      %254 = sbr.rel (%p252) target = $region40
    $region39: #{naive_eef_estimator_forward.1} parent=5 // pred_region
      // Predicated region
      $region41: #{naive_eef_estimator_forward.1} parent=39 // pred_check
        %p255 = pneg %p34
      $region42: #{naive_eef_estimator_forward.1} parent=39 // pred_check_branch
        %257 = sbr.rel (%p255) target = $region44
      $region43: #{naive_eef_estimator_forward.1} parent=39 // pred_region
        %s258 = smul.u32 32, %s14
        %p259 = scmp.lt.s32.totalorder %s258, 63
        %s260 = scalar_select %p259, %s258, 63
        %s261 = smul.addr %s260, 4
        %s262 = scalar_lea.vmem %s0, %s261
        %s263 = smul.u32 32, %s14
      $region44: #{naive_eef_estimator_forward.1} parent=39 // pred_fallthru
        _
      // Predicated region
      $region45: #{naive_eef_estimator_forward.1} parent=39 // pred_check
        %p264 = pneg %p144
      $region46: #{naive_eef_estimator_forward.1} parent=39 // pred_check_branch
        %266 = sbr.rel (%p264) target = $region48
      $region47: #{naive_eef_estimator_forward.1} parent=39 // pred_region
        %p267 = scmp.lt.s32.totalorder %s14, 1
        %s268 = scalar_select %p267, %s14, 1
        %s269 = scalar_lea.vmem %s5, %s268
      $region48: #{naive_eef_estimator_forward.1} parent=39 // pred_fallthru
        _
    $region40: #{naive_eef_estimator_forward.1} parent=5 // pred_fallthru
      _
    %p270 = scmp.le.s32.totalorder 1, %s14
    %p271 = scmp.lt.s32.totalorder %s14, 3
    %p272 = pnand %p270, %p271
    %p273 = pneg %p272
    // Predicated region
    $region49: #{naive_eef_estimator_forward.1} parent=5 // pred_check
      _
    $region50: #{naive_eef_estimator_forward.1} parent=5 // pred_check_branch
      %275 = sbr.rel (%p272) target = $region52
    $region51: #{naive_eef_estimator_forward.1} parent=5 // pred_region
      %s276 = ssub.s32 %s14, 1
      %s277 = smul.u32 32, %s19
      %p278 = scmp.lt.s32.totalorder %s277, 63
      %s279 = scalar_select %p278, %s277, 63
      %s280 = smul.addr %s279, 4
      %s281 = scalar_lea.vmem %s0, %s280
      %p282 = pneg %p40
      %p283 = pneg %p37
      %p284 = pneg %p61
      %p285 = pneg %p58
      %p286 = pneg %p82
      %p287 = pneg %p79
      %p288 = pneg %p103
      %p289 = pneg %p100
      %p290 = pneg %p124
      %p291 = pneg %p121
      %p292 = scmp.lt.s32.totalorder %s19, 1
      %s293 = scalar_select %p292, %s19, 1
      %s294 = scalar_lea.vmem %s5, %s293
      %p295 = pneg %p150
      %p296 = pneg %p147
      %p297 = pneg %p171
      %p298 = pneg %p168
      %p299 = pneg %p192
      %p300 = pneg %p189
      %p301 = pneg %p218
      %p302 = pneg %p215
      %p303 = scmp.lt.s32.totalorder %s19, 1
      %s304 = scalar_select %p303, %s19, 1
      %s305 = scalar_lea.vmem %s8, %s304
      %s306 = smul.u32 32, %s19
      %p307 = scmp.lt.s32.totalorder %s306, 63
      %s308 = scalar_select %p307, %s306, 63
      %s309 = smul.addr %s308, 4
      %s310 = scalar_lea.vmem %s0, %s309
      %s311 = smul.u32 32, %s19
      %p312 = scmp.lt.s32.totalorder %s19, 1
      %s313 = scalar_select %p312, %s19, 1
      %s314 = scalar_lea.vmem %s5, %s313
      %p315 = scmp.lt.s32.totalorder %s19, 1
      %s316 = scalar_select %p315, %s19, 1
      %s317 = scalar_lea.vmem %s8, %s316
      %v319 = vld [vmem:[%s310] sm:$0xf]
      %v320 = vld [vmem:[%s310 + $0x4] sm:$0xf]
      %v321 = vld [vmem:[%s310 + $0x8] sm:$0xf]
      %v322 = vld [vmem:[%s310 + $0xc] sm:$0xf]
      %v323 = vld [vmem:[%s310 + $0x10] sm:$0xf]
      %v324 = vld [vmem:[%s310 + $0x14] sm:$0xf]
      %v325 = vld [vmem:[%s310 + $0x18] sm:$0xf]
      %v326 = vld [vmem:[%s310 + $0x1c] sm:$0xf]
      %v327 = vld [vmem:[%s310 + $0x20] sm:$0xf]
      %v328 = vld [vmem:[%s310 + $0x24] sm:$0xf]
      %v329 = vld [vmem:[%s310 + $0x28] sm:$0xf]
      %v330 = vld [vmem:[%s310 + $0x2c] sm:$0xf]
      %v331 = vld [vmem:[%s310 + $0x30] sm:$0xf]
      %v332 = vld [vmem:[%s310 + $0x34] sm:$0xf]
      %v333 = vld [vmem:[%s310 + $0x38] sm:$0xf]
      %v334 = vld [vmem:[%s310 + $0x3c] sm:$0xf]
      %v335 = vld [vmem:[%s310 + $0x40] sm:$0xf]
      %v336 = vld [vmem:[%s310 + $0x44] sm:$0xf]
      %v337 = vld [vmem:[%s310 + $0x48] sm:$0xf]
      %v338 = vld [vmem:[%s310 + $0x4c] sm:$0xf]
      %v339 = vld [vmem:[%s310 + $0x50] sm:$0xf]
      %v340 = vld [vmem:[%s310 + $0x54] sm:$0xf]
      %v341 = vld [vmem:[%s310 + $0x58] sm:$0xf]
      %v342 = vld [vmem:[%s310 + $0x5c] sm:$0xf]
      %v343 = vld [vmem:[%s310 + $0x60] sm:$0xf]
      %v344 = vld [vmem:[%s310 + $0x64] sm:$0xf]
      %v345 = vld [vmem:[%s310 + $0x68] sm:$0xf]
      %v346 = vld [vmem:[%s310 + $0x6c] sm:$0xf]
      %v347 = vld [vmem:[%s310 + $0x70] sm:$0xf]
      %v348 = vld [vmem:[%s310 + $0x74] sm:$0xf]
      %v349 = vld [vmem:[%s310 + $0x78] sm:$0xf]
      %v350 = vld [vmem:[%s310 + $0x7c] sm:$0xf]
      %v351 = vld [vmem:[%s1] sm:$0xf]
      %v352 = vld [vmem:[%s1 + $0x4] sm:$0xf]
      %v353 = vld [vmem:[%s1 + $0x8] sm:$0xf]
      %v354 = vld [vmem:[%s1 + $0xc] sm:$0xf]
      %v355 = vld [vmem:[%s2] sm:$0x1]
      %v357 = vlaneseq
      %v358 = vshrl.u32 %v357, 7
      %v359 = vsub.s32 0, %v358
      %v360 = vrot.slane %v355, %v359
      %v394 = vunpack.c.l.b16 %v319
      %v395 = vunpack.c.l.b16 %v320
      %v396 = vunpack.c.l.b16 %v321
      %v397 = vunpack.c.l.b16 %v322
      %v398 = vunpack.c.l.b16 %v323
      %v399 = vunpack.c.l.b16 %v324
      %v400 = vunpack.c.l.b16 %v325
      %v401 = vunpack.c.l.b16 %v326
      %v402 = vunpack.c.l.b16 %v327
      %v403 = vunpack.c.l.b16 %v328
      %v404 = vunpack.c.l.b16 %v329
      %v405 = vunpack.c.l.b16 %v330
      %v406 = vunpack.c.l.b16 %v331
      %v407 = vunpack.c.l.b16 %v332
      %v408 = vunpack.c.l.b16 %v333
      %v409 = vunpack.c.l.b16 %v334
      %v410 = vunpack.c.l.b16 %v335
      %v411 = vunpack.c.l.b16 %v336
      %v412 = vunpack.c.l.b16 %v337
      %v413 = vunpack.c.l.b16 %v338
      %v414 = vunpack.c.l.b16 %v339
      %v415 = vunpack.c.l.b16 %v340
      %v416 = vunpack.c.l.b16 %v341
      %v417 = vunpack.c.l.b16 %v342
      %v418 = vunpack.c.l.b16 %v343
      %v419 = vunpack.c.l.b16 %v344
      %v420 = vunpack.c.l.b16 %v345
      %v421 = vunpack.c.l.b16 %v346
      %v422 = vunpack.c.l.b16 %v347
      %v423 = vunpack.c.l.b16 %v348
      %v424 = vunpack.c.l.b16 %v349
      %v425 = vunpack.c.l.b16 %v350
      %v426 = vpack.c.b16 %v395, %v394
      %v427 = vpack.c.b16 %v397, %v396
      %v428 = vpack.c.b16 %v399, %v398
      %v429 = vpack.c.b16 %v401, %v400
      %v430 = vpack.c.b16 %v403, %v402
      %v431 = vpack.c.b16 %v405, %v404
      %v432 = vpack.c.b16 %v407, %v406
      %v433 = vpack.c.b16 %v409, %v408
      %v434 = vpack.c.b16 %v411, %v410
      %v435 = vpack.c.b16 %v413, %v412
      %v436 = vpack.c.b16 %v415, %v414
      %v437 = vpack.c.b16 %v417, %v416
      %v438 = vpack.c.b16 %v419, %v418
      %v439 = vpack.c.b16 %v421, %v420
      %v440 = vpack.c.b16 %v423, %v422
      %v441 = vpack.c.b16 %v425, %v424
      %v446 = vunpack.c.l.b16 %v351
      %v447 = vunpack.c.l.b16 %v352
      %v448 = vunpack.c.l.b16 %v353
      %v449 = vunpack.c.l.b16 %v354
      %v450 = vpack.c.b16 %v447, %v446
      %v451 = vpack.c.b16 %v449, %v448
      %vm454 = vcmask 261120
      %v456 = vsel %vm454, %v426, 0
      %v459 = vsel %vm454, %v427, 0
      %v462 = vsel %vm454, %v428, 0
      %v465 = vsel %vm454, %v429, 0
      %v468 = vsel %vm454, %v430, 0
      %v471 = vsel %vm454, %v431, 0
      %v474 = vsel %vm454, %v432, 0
      %v477 = vsel %vm454, %v433, 0
      %v480 = vsel %vm454, %v434, 0
      %v483 = vsel %vm454, %v435, 0
      %v486 = vsel %vm454, %v436, 0
      %v489 = vsel %vm454, %v437, 0
      %v492 = vsel %vm454, %v438, 0
      %v495 = vsel %vm454, %v439, 0
      %v498 = vsel %vm454, %v440, 0
      %v501 = vsel %vm454, %v441, 0
      %503 = vmatprep.subr.bf16.mxu0 0
      %504 = vmatpush1.bf16.msra.mxu0 0
      %505 = vmatprep.subr.bf16.mxu0 0
      %506 = vmatpush1.bf16.msra.mxu0 0
      %507 = vmatprep.subr.bf16.mxu0 0
      %508 = vmatpush1.bf16.msra.mxu0 0
      %509 = vmatprep.subr.bf16.mxu0 0
      %510 = vmatpush1.bf16.msra.mxu0 0
      %511 = vmatprep.subr.bf16.mxu0 0
      %512 = vmatpush1.bf16.msra.mxu0 0
      %513 = vmatprep.subr.bf16.mxu0 0
      %514 = vmatpush1.bf16.msra.mxu0 0
      %515 = vmatprep.subr.bf16.mxu0 0
      %516 = vmatpush1.bf16.msra.mxu0 %v451
      %517 = vmatprep.subr.bf16.mxu0 0
      %518 = vmatpush1.bf16.msra.mxu0 %v450
      %519 = vmatprep.subr.bf16.mxu0 0
      %520 = vmatpush2.bf16.msra.mxu0 0
      %521 = vmatprep.subr.bf16.mxu0 0
      %522 = vmatpush2.bf16.msra.mxu0 0
      %523 = vmatprep.subr.bf16.mxu0 0
      %524 = vmatpush2.bf16.msra.mxu0 0
      %525 = vmatprep.subr.bf16.mxu0 0
      %526 = vmatpush2.bf16.msra.mxu0 0
      %527 = vmatprep.subr.bf16.mxu0 0
      %528 = vmatpush2.bf16.msra.mxu0 0
      %529 = vmatprep.subr.bf16.mxu0 0
      %530 = vmatpush2.bf16.msra.mxu0 0
      %531 = vmatprep.subr.bf16.mxu0 0
      %532 = vmatpush2.bf16.msra.mxu0 0
      %533 = vmatprep.subr.bf16.mxu0 0
      %534 = vmatpush2.bf16.msra.mxu0 0
      %535 = vmatprep.mubr.bf16.mxu0 0
      %536 = vmatmul.mubr.bf16.gmra.mxu0 %v456
      %v537 = vpop.f32.mrf.mxu0
      %v538 = vadd.f32 %v360, %v537
      %v539 = vpop.f32.mrf.mxu0
      %v540 = vpop.f32.mrf.mxu0
      %v541 = vadd.f32 %v360, %v540
      %v542 = vpop.f32.mrf.mxu0
      %543 = vmatprep.mubr.bf16.mxu0 0
      %544 = vmatmul.mubr.bf16.gmra.mxu0 %v459
      %v545 = vpop.f32.mrf.mxu0
      %v546 = vadd.f32 %v360, %v545
      %v547 = vpop.f32.mrf.mxu0
      %v548 = vpop.f32.mrf.mxu0
      %v549 = vadd.f32 %v360, %v548
      %v550 = vpop.f32.mrf.mxu0
      %551 = vmatprep.mubr.bf16.mxu0 0
      %552 = vmatmul.mubr.bf16.gmra.mxu0 %v462
      %v553 = vpop.f32.mrf.mxu0
      %v554 = vadd.f32 %v360, %v553
      %v555 = vpop.f32.mrf.mxu0
      %v556 = vpop.f32.mrf.mxu0
      %v557 = vadd.f32 %v360, %v556
      %v558 = vpop.f32.mrf.mxu0
      %559 = vmatprep.mubr.bf16.mxu0 0
      %560 = vmatmul.mubr.bf16.gmra.mxu0 %v465
      %v561 = vpop.f32.mrf.mxu0
      %v562 = vadd.f32 %v360, %v561
      %v563 = vpop.f32.mrf.mxu0
      %v564 = vpop.f32.mrf.mxu0
      %v565 = vadd.f32 %v360, %v564
      %v566 = vpop.f32.mrf.mxu0
      %567 = vmatprep.mubr.bf16.mxu0 0
      %568 = vmatmul.mubr.bf16.gmra.mxu0 %v468
      %v569 = vpop.f32.mrf.mxu0
      %v570 = vadd.f32 %v360, %v569
      %v571 = vpop.f32.mrf.mxu0
      %v572 = vpop.f32.mrf.mxu0
      %v573 = vadd.f32 %v360, %v572
      %v574 = vpop.f32.mrf.mxu0
      %575 = vmatprep.mubr.bf16.mxu0 0
      %576 = vmatmul.mubr.bf16.gmra.mxu0 %v471
      %v577 = vpop.f32.mrf.mxu0
      %v578 = vadd.f32 %v360, %v577
      %v579 = vpop.f32.mrf.mxu0
      %v580 = vpop.f32.mrf.mxu0
      %v581 = vadd.f32 %v360, %v580
      %v582 = vpop.f32.mrf.mxu0
      %583 = vmatprep.mubr.bf16.mxu0 0
      %584 = vmatmul.mubr.bf16.gmra.mxu0 %v474
      %v585 = vpop.f32.mrf.mxu0
      %v586 = vadd.f32 %v360, %v585
      %v587 = vpop.f32.mrf.mxu0
      %v588 = vpop.f32.mrf.mxu0
      %v589 = vadd.f32 %v360, %v588
      %v590 = vpop.f32.mrf.mxu0
      %591 = vmatprep.mubr.bf16.mxu0 0
      %592 = vmatmul.mubr.bf16.gmra.mxu0 %v477
      %v593 = vpop.f32.mrf.mxu0
      %v594 = vadd.f32 %v360, %v593
      %v595 = vpop.f32.mrf.mxu0
      %v596 = vpop.f32.mrf.mxu0
      %v597 = vadd.f32 %v360, %v596
      %v598 = vpop.f32.mrf.mxu0
      %599 = vmatprep.mubr.bf16.mxu0 0
      %600 = vmatmul.mubr.bf16.gmra.mxu0 %v480
      %v601 = vpop.f32.mrf.mxu0
      %v602 = vadd.f32 %v360, %v601
      %v603 = vpop.f32.mrf.mxu0
      %v604 = vpop.f32.mrf.mxu0
      %v605 = vadd.f32 %v360, %v604
      %v606 = vpop.f32.mrf.mxu0
      %607 = vmatprep.mubr.bf16.mxu0 0
      %608 = vmatmul.mubr.bf16.gmra.mxu0 %v483
      %v609 = vpop.f32.mrf.mxu0
      %v610 = vadd.f32 %v360, %v609
      %v611 = vpop.f32.mrf.mxu0
      %v612 = vpop.f32.mrf.mxu0
      %v613 = vadd.f32 %v360, %v612
      %v614 = vpop.f32.mrf.mxu0
      %615 = vmatprep.mubr.bf16.mxu0 0
      %616 = vmatmul.mubr.bf16.gmra.mxu0 %v486
      %v617 = vpop.f32.mrf.mxu0
      %v618 = vadd.f32 %v360, %v617
      %v619 = vpop.f32.mrf.mxu0
      %v620 = vpop.f32.mrf.mxu0
      %v621 = vadd.f32 %v360, %v620
      %v622 = vpop.f32.mrf.mxu0
      %623 = vmatprep.mubr.bf16.mxu0 0
      %624 = vmatmul.mubr.bf16.gmra.mxu0 %v489
      %v625 = vpop.f32.mrf.mxu0
      %v626 = vadd.f32 %v360, %v625
      %v627 = vpop.f32.mrf.mxu0
      %v628 = vpop.f32.mrf.mxu0
      %v629 = vadd.f32 %v360, %v628
      %v630 = vpop.f32.mrf.mxu0
      %631 = vmatprep.mubr.bf16.mxu0 0
      %632 = vmatmul.mubr.bf16.gmra.mxu0 %v492
      %v633 = vpop.f32.mrf.mxu0
      %v634 = vadd.f32 %v360, %v633
      %v635 = vpop.f32.mrf.mxu0
      %v636 = vpop.f32.mrf.mxu0
      %v637 = vadd.f32 %v360, %v636
      %v638 = vpop.f32.mrf.mxu0
      %639 = vmatprep.mubr.bf16.mxu0 0
      %640 = vmatmul.mubr.bf16.gmra.mxu0 %v495
      %v641 = vpop.f32.mrf.mxu0
      %v642 = vadd.f32 %v360, %v641
      %v643 = vpop.f32.mrf.mxu0
      %v644 = vpop.f32.mrf.mxu0
      %v645 = vadd.f32 %v360, %v644
      %v646 = vpop.f32.mrf.mxu0
      %647 = vmatprep.mubr.bf16.mxu0 0
      %648 = vmatmul.mubr.bf16.gmra.mxu0 %v498
      %v649 = vpop.f32.mrf.mxu0
      %v650 = vadd.f32 %v360, %v649
      %v651 = vpop.f32.mrf.mxu0
      %v652 = vpop.f32.mrf.mxu0
      %v653 = vadd.f32 %v360, %v652
      %v654 = vpop.f32.mrf.mxu0
      %655 = vmatprep.mubr.bf16.mxu0 0
      %656 = vmatmul.mubr.bf16.gmra.mxu0 %v501
      %v657 = vpop.f32.mrf.mxu0
      %v658 = vadd.f32 %v360, %v657
      %v659 = vpop.f32.mrf.mxu0
      %v660 = vpop.f32.mrf.mxu0
      %v661 = vadd.f32 %v360, %v660
      %v662 = vpop.f32.mrf.mxu0
      %663 = vdwg.mxu0
      %v664 = vmax.f32 %v538, 0.0
      %v665 = vmax.f32 %v541, 0.0
      %v666 = vmax.f32 %v546, 0.0
      %v667 = vmax.f32 %v549, 0.0
      %v668 = vmax.f32 %v554, 0.0
      %v669 = vmax.f32 %v557, 0.0
      %v670 = vmax.f32 %v562, 0.0
      %v671 = vmax.f32 %v565, 0.0
      %v672 = vmax.f32 %v570, 0.0
      %v673 = vmax.f32 %v573, 0.0
      %v674 = vmax.f32 %v578, 0.0
      %v675 = vmax.f32 %v581, 0.0
      %v676 = vmax.f32 %v586, 0.0
      %v677 = vmax.f32 %v589, 0.0
      %v678 = vmax.f32 %v594, 0.0
      %v679 = vmax.f32 %v597, 0.0
      %v680 = vmax.f32 %v602, 0.0
      %v681 = vmax.f32 %v605, 0.0
      %v682 = vmax.f32 %v610, 0.0
      %v683 = vmax.f32 %v613, 0.0
      %v684 = vmax.f32 %v618, 0.0
      %v685 = vmax.f32 %v621, 0.0
      %v686 = vmax.f32 %v626, 0.0
      %v687 = vmax.f32 %v629, 0.0
      %v688 = vmax.f32 %v634, 0.0
      %v689 = vmax.f32 %v637, 0.0
      %v690 = vmax.f32 %v642, 0.0
      %v691 = vmax.f32 %v645, 0.0
      %v692 = vmax.f32 %v650, 0.0
      %v693 = vmax.f32 %v653, 0.0
      %v694 = vmax.f32 %v658, 0.0
      %v695 = vmax.f32 %v661, 0.0
      %696 = vmatprep.subr.mxu0 0.0
      %697 = vmatpush1.msra.mxu0 %v679
      %698 = vmatprep.subr.mxu0 0.0
      %699 = vmatpush1.msra.mxu0 %v678
      %700 = vmatprep.subr.mxu0 0.0
      %701 = vmatpush1.msra.mxu0 %v677
      %702 = vmatprep.subr.mxu0 0.0
      %703 = vmatpush1.msra.mxu0 %v676
      %704 = vmatprep.subr.mxu0 0.0
      %705 = vmatpush1.msra.mxu0 %v675
      %706 = vmatprep.subr.mxu0 0.0
      %707 = vmatpush1.msra.mxu0 %v674
      %708 = vmatprep.subr.mxu0 0.0
      %709 = vmatpush1.msra.mxu0 %v673
      %710 = vmatprep.subr.mxu0 0.0
      %711 = vmatpush1.msra.mxu0 %v672
      %712 = vmatprep.subr.mxu0 0.0
      %713 = vmatpush1.msra.mxu0 %v671
      %714 = vmatprep.subr.mxu0 0.0
      %715 = vmatpush1.msra.mxu0 %v670
      %716 = vmatprep.subr.mxu0 0.0
      %717 = vmatpush1.msra.mxu0 %v669
      %718 = vmatprep.subr.mxu0 0.0
      %719 = vmatpush1.msra.mxu0 %v668
      %720 = vmatprep.subr.mxu0 0.0
      %721 = vmatpush1.msra.mxu0 %v667
      %722 = vmatprep.subr.mxu0 0.0
      %723 = vmatpush1.msra.mxu0 %v666
      %724 = vmatprep.subr.mxu0 0.0
      %725 = vmatpush1.msra.mxu0 %v665
      %726 = vmatprep.subr.mxu0 0.0
      %727 = vmatpush1.msra.mxu0 %v664
      %728 = vmatprep.subr.mxu0 0.0
      %729 = vmatpush2.msra.mxu0 %v695
      %730 = vmatprep.subr.mxu0 0.0
      %731 = vmatpush2.msra.mxu0 %v694
      %732 = vmatprep.subr.mxu0 0.0
      %733 = vmatpush2.msra.mxu0 %v693
      %734 = vmatprep.subr.mxu0 0.0
      %735 = vmatpush2.msra.mxu0 %v692
      %736 = vmatprep.subr.mxu0 0.0
      %737 = vmatpush2.msra.mxu0 %v691
      %738 = vmatprep.subr.mxu0 0.0
      %739 = vmatpush2.msra.mxu0 %v690
      %740 = vmatprep.subr.mxu0 0.0
      %741 = vmatpush2.msra.mxu0 %v689
      %742 = vmatprep.subr.mxu0 0.0
      %743 = vmatpush2.msra.mxu0 %v688
      %744 = vmatprep.subr.mxu0 0.0
      %745 = vmatpush2.msra.mxu0 %v687
      %746 = vmatprep.subr.mxu0 0.0
      %747 = vmatpush2.msra.mxu0 %v686
      %748 = vmatprep.subr.mxu0 0.0
      %749 = vmatpush2.msra.mxu0 %v685
      %750 = vmatprep.subr.mxu0 0.0
      %751 = vmatpush2.msra.mxu0 %v684
      %752 = vmatprep.subr.mxu0 0.0
      %753 = vmatpush2.msra.mxu0 %v683
      %754 = vmatprep.subr.mxu0 0.0
      %755 = vmatpush2.msra.mxu0 %v682
      %756 = vmatprep.subr.mxu0 0.0
      %757 = vmatpush2.msra.mxu0 %v681
      %758 = vmatprep.subr.mxu0 0.0
      %759 = vmatpush2.msra.mxu0 %v680
      %760 = vmatprep.mubr.f32.mxu0 0.00390625
      %761 = vmatmul.mubr.f32.gmra.mxu0 0.00390625
      %v762 = vpop.f32.mrf.mxu0
      %v763 = vadd.f32 0.0, %v762
      %v764 = vpop.f32.mrf.mxu0
      %765 = vdwg.mxu0
      %v766 = vld [vmem:[%s3] sm:$0xff]
      %v767 = vld [vmem:[%s3 + $0x8] sm:$0xff]
      %v768 = vld [vmem:[%s3 + $0x10] sm:$0xff]
      %v769 = vld [vmem:[%s3 + $0x18] sm:$0xff]
      %v770 = vld [vmem:[%s3 + $0x20] sm:$0xff]
      %v771 = vld [vmem:[%s3 + $0x28] sm:$0xff]
      %v772 = vld [vmem:[%s3 + $0x30] sm:$0xff]
      %v773 = vld [vmem:[%s3 + $0x38] sm:$0xff]
      %v774 = vld [vmem:[%s3 + $0x40] sm:$0xff]
      %v775 = vld [vmem:[%s3 + $0x48] sm:$0xff]
      %v776 = vld [vmem:[%s3 + $0x50] sm:$0xff]
      %v777 = vld [vmem:[%s3 + $0x58] sm:$0xff]
      %v778 = vld [vmem:[%s3 + $0x60] sm:$0xff]
      %v779 = vld [vmem:[%s3 + $0x68] sm:$0xff]
      %v780 = vld [vmem:[%s3 + $0x70] sm:$0xff]
      %v781 = vld [vmem:[%s3 + $0x78] sm:$0xff]
      %v782 = vld [vmem:[%s4] sm:$0x1]
      %783 = vmatprep.subr.mxu0 0.0
      %784 = vmatpush1.msra.mxu0 %v781
      %785 = vmatprep.subr.mxu0 0.0
      %786 = vmatpush1.msra.mxu0 %v780
      %787 = vmatprep.subr.mxu0 0.0
      %788 = vmatpush1.msra.mxu0 %v779
      %789 = vmatprep.subr.mxu0 0.0
      %790 = vmatpush1.msra.mxu0 %v778
      %791 = vmatprep.subr.mxu0 0.0
      %792 = vmatpush1.msra.mxu0 %v777
      %793 = vmatprep.subr.mxu0 0.0
      %794 = vmatpush1.msra.mxu0 %v776
      %795 = vmatprep.subr.mxu0 0.0
      %796 = vmatpush1.msra.mxu0 %v775
      %797 = vmatprep.subr.mxu0 0.0
      %798 = vmatpush1.msra.mxu0 %v774
      %799 = vmatprep.subr.mxu0 0.0
      %800 = vmatpush1.msra.mxu0 %v773
      %801 = vmatprep.subr.mxu0 0.0
      %802 = vmatpush1.msra.mxu0 %v772
      %803 = vmatprep.subr.mxu0 0.0
      %804 = vmatpush1.msra.mxu0 %v771
      %805 = vmatprep.subr.mxu0 0.0
      %806 = vmatpush1.msra.mxu0 %v770
      %807 = vmatprep.subr.mxu0 0.0
      %808 = vmatpush1.msra.mxu0 %v769
      %809 = vmatprep.subr.mxu0 0.0
      %810 = vmatpush1.msra.mxu0 %v768
      %811 = vmatprep.subr.mxu0 0.0
      %812 = vmatpush1.msra.mxu0 %v767
      %813 = vmatprep.subr.mxu0 0.0
      %814 = vmatpush1.msra.mxu0 %v766
      %815 = vmatprep.subr.mxu0 0.0
      %816 = vmatpush2.msra.mxu0 0.0
      %817 = vmatprep.subr.mxu0 0.0
      %818 = vmatpush2.msra.mxu0 0.0
      %819 = vmatprep.subr.mxu0 0.0
      %820 = vmatpush2.msra.mxu0 0.0
      %821 = vmatprep.subr.mxu0 0.0
      %822 = vmatpush2.msra.mxu0 0.0
      %823 = vmatprep.subr.mxu0 0.0
      %824 = vmatpush2.msra.mxu0 0.0
      %825 = vmatprep.subr.mxu0 0.0
      %826 = vmatpush2.msra.mxu0 0.0
      %827 = vmatprep.subr.mxu0 0.0
      %828 = vmatpush2.msra.mxu0 0.0
      %829 = vmatprep.subr.mxu0 0.0
      %830 = vmatpush2.msra.mxu0 0.0
      %831 = vmatprep.subr.mxu0 0.0
      %832 = vmatpush2.msra.mxu0 0.0
      %833 = vmatprep.subr.mxu0 0.0
      %834 = vmatpush2.msra.mxu0 0.0
      %835 = vmatprep.subr.mxu0 0.0
      %836 = vmatpush2.msra.mxu0 0.0
      %837 = vmatprep.subr.mxu0 0.0
      %838 = vmatpush2.msra.mxu0 0.0
      %839 = vmatprep.subr.mxu0 0.0
      %840 = vmatpush2.msra.mxu0 0.0
      %841 = vmatprep.subr.mxu0 0.0
      %842 = vmatpush2.msra.mxu0 0.0
      %843 = vmatprep.subr.mxu0 0.0
      %844 = vmatpush2.msra.mxu0 0.0
      %845 = vmatprep.subr.mxu0 0.0
      %846 = vmatpush2.msra.mxu0 0.0
      %847 = vmatprep.mubr.f32.mxu0 0.0
      %848 = vmatmul.mubr.f32.gmra.mxu0 %v763
      %v849 = vpop.f32.mrf.mxu0
      %v850 = vadd.f32 %v782, %v849
      %v851 = vpop.f32.mrf.mxu0
      %852 = vdwg.mxu0
      %v853 = vld [vmem:[%s7] sm:$0xf]
      %v854 = vld [vmem:[%s6] sm:$0xff]
      %v855 = vld [vmem:[%s6 + $0x8] sm:$0xff]
      %v856 = vld [vmem:[%s6 + $0x10] sm:$0xff]
      %v857 = vld [vmem:[%s6 + $0x18] sm:$0xff]
      %v858 = vld [vmem:[%s6 + $0x20] sm:$0xff]
      %v859 = vld [vmem:[%s6 + $0x28] sm:$0xff]
      %v860 = vld [vmem:[%s6 + $0x30] sm:$0xff]
      %v861 = vld [vmem:[%s6 + $0x38] sm:$0xff]
      %vm862 = vcmask 523264
      %v864 = vsel %vm862, %v850, 0
      %866 = vmatprep.subr.mxu0 0.0
      %867 = vmatpush1.msra.mxu0 0.0
      %868 = vmatprep.subr.mxu0 0.0
      %869 = vmatpush1.msra.mxu0 0.0
      %870 = vmatprep.subr.mxu0 0.0
      %871 = vmatpush1.msra.mxu0 0.0
      %872 = vmatprep.subr.mxu0 0.0
      %873 = vmatpush1.msra.mxu0 0.0
      %874 = vmatprep.subr.mxu0 0.0
      %875 = vmatpush1.msra.mxu0 0.0
      %876 = vmatprep.subr.mxu0 0.0
      %877 = vmatpush1.msra.mxu0 0.0
      %878 = vmatprep.subr.mxu0 0.0
      %879 = vmatpush1.msra.mxu0 0.0
      %880 = vmatprep.subr.mxu0 0.0
      %881 = vmatpush1.msra.mxu0 0.0
      %882 = vmatprep.subr.mxu0 0.0
      %883 = vmatpush1.msra.mxu0 %v861
      %884 = vmatprep.subr.mxu0 0.0
      %885 = vmatpush1.msra.mxu0 %v860
      %886 = vmatprep.subr.mxu0 0.0
      %887 = vmatpush1.msra.mxu0 %v859
      %888 = vmatprep.subr.mxu0 0.0
      %889 = vmatpush1.msra.mxu0 %v858
      %890 = vmatprep.subr.mxu0 0.0
      %891 = vmatpush1.msra.mxu0 %v857
      %892 = vmatprep.subr.mxu0 0.0
      %893 = vmatpush1.msra.mxu0 %v856
      %894 = vmatprep.subr.mxu0 0.0
      %895 = vmatpush1.msra.mxu0 %v855
      %896 = vmatprep.subr.mxu0 0.0
      %897 = vmatpush1.msra.mxu0 %v854
      %898 = vmatprep.subr.mxu0 0.0
      %899 = vmatpush2.msra.mxu0 0.0
      %900 = vmatprep.subr.mxu0 0.0
      %901 = vmatpush2.msra.mxu0 0.0
      %902 = vmatprep.subr.mxu0 0.0
      %903 = vmatpush2.msra.mxu0 0.0
      %904 = vmatprep.subr.mxu0 0.0
      %905 = vmatpush2.msra.mxu0 0.0
      %906 = vmatprep.subr.mxu0 0.0
      %907 = vmatpush2.msra.mxu0 0.0
      %908 = vmatprep.subr.mxu0 0.0
      %909 = vmatpush2.msra.mxu0 0.0
      %910 = vmatprep.subr.mxu0 0.0
      %911 = vmatpush2.msra.mxu0 0.0
      %912 = vmatprep.subr.mxu0 0.0
      %913 = vmatpush2.msra.mxu0 0.0
      %914 = vmatprep.subr.mxu0 0.0
      %915 = vmatpush2.msra.mxu0 0.0
      %916 = vmatprep.subr.mxu0 0.0
      %917 = vmatpush2.msra.mxu0 0.0
      %918 = vmatprep.subr.mxu0 0.0
      %919 = vmatpush2.msra.mxu0 0.0
      %920 = vmatprep.subr.mxu0 0.0
      %921 = vmatpush2.msra.mxu0 0.0
      %922 = vmatprep.subr.mxu0 0.0
      %923 = vmatpush2.msra.mxu0 0.0
      %924 = vmatprep.subr.mxu0 0.0
      %925 = vmatpush2.msra.mxu0 0.0
      %926 = vmatprep.subr.mxu0 0.0
      %927 = vmatpush2.msra.mxu0 0.0
      %928 = vmatprep.subr.mxu0 0.0
      %929 = vmatpush2.msra.mxu0 0.0
      %930 = vmatprep.mubr.f32.mxu0 0.0
      %931 = vmatmul.mubr.f32.gmra.mxu0 %v864
      %v932 = vpop.f32.mrf.mxu0
      %v933 = vadd.f32 %v853, %v932
      %v934 = vpop.f32.mrf.mxu0
      %935 = vdwg.mxu0
      %v936 = vmax.f32 %v933, 0.0
      %s937 = scalar_lea.vmem %s6, 64
      %v938 = vld [vmem:[%s937] sm:$0xff]
      %v939 = vld [vmem:[%s937 + $0x8] sm:$0xff]
      %v940 = vld [vmem:[%s937 + $0x10] sm:$0xff]
      %v941 = vld [vmem:[%s937 + $0x18] sm:$0xff]
      %v942 = vld [vmem:[%s937 + $0x20] sm:$0xff]
      %v943 = vld [vmem:[%s937 + $0x28] sm:$0xff]
      %v944 = vld [vmem:[%s937 + $0x30] sm:$0xff]
      %v945 = vld [vmem:[%s937 + $0x38] sm:$0xff]
      %v947 = vrot.slane %v853, 1
      %v950 = vsel %vm862, %v936, 0
      %952 = vmatprep.subr.mxu0 0.0
      %953 = vmatpush1.msra.mxu0 0.0
      %954 = vmatprep.subr.mxu0 0.0
      %955 = vmatpush1.msra.mxu0 0.0
      %956 = vmatprep.subr.mxu0 0.0
      %957 = vmatpush1.msra.mxu0 0.0
      %958 = vmatprep.subr.mxu0 0.0
      %959 = vmatpush1.msra.mxu0 0.0
      %960 = vmatprep.subr.mxu0 0.0
      %961 = vmatpush1.msra.mxu0 0.0
      %962 = vmatprep.subr.mxu0 0.0
      %963 = vmatpush1.msra.mxu0 0.0
      %964 = vmatprep.subr.mxu0 0.0
      %965 = vmatpush1.msra.mxu0 0.0
      %966 = vmatprep.subr.mxu0 0.0
      %967 = vmatpush1.msra.mxu0 0.0
      %968 = vmatprep.subr.mxu0 0.0
      %969 = vmatpush1.msra.mxu0 %v945
      %970 = vmatprep.subr.mxu0 0.0
      %971 = vmatpush1.msra.mxu0 %v944
      %972 = vmatprep.subr.mxu0 0.0
      %973 = vmatpush1.msra.mxu0 %v943
      %974 = vmatprep.subr.mxu0 0.0
      %975 = vmatpush1.msra.mxu0 %v942
      %976 = vmatprep.subr.mxu0 0.0
      %977 = vmatpush1.msra.mxu0 %v941
      %978 = vmatprep.subr.mxu0 0.0
      %979 = vmatpush1.msra.mxu0 %v940
      %980 = vmatprep.subr.mxu0 0.0
      %981 = vmatpush1.msra.mxu0 %v939
      %982 = vmatprep.subr.mxu0 0.0
      %983 = vmatpush1.msra.mxu0 %v938
      %984 = vmatprep.subr.mxu0 0.0
      %985 = vmatpush2.msra.mxu0 0.0
      %986 = vmatprep.subr.mxu0 0.0
      %987 = vmatpush2.msra.mxu0 0.0
      %988 = vmatprep.subr.mxu0 0.0
      %989 = vmatpush2.msra.mxu0 0.0
      %990 = vmatprep.subr.mxu0 0.0
      %991 = vmatpush2.msra.mxu0 0.0
      %992 = vmatprep.subr.mxu0 0.0
      %993 = vmatpush2.msra.mxu0 0.0
      %994 = vmatprep.subr.mxu0 0.0
      %995 = vmatpush2.msra.mxu0 0.0
      %996 = vmatprep.subr.mxu0 0.0
      %997 = vmatpush2.msra.mxu0 0.0
      %998 = vmatprep.subr.mxu0 0.0
      %999 = vmatpush2.msra.mxu0 0.0
      %1000 = vmatprep.subr.mxu0 0.0
      %1001 = vmatpush2.msra.mxu0 0.0
      %1002 = vmatprep.subr.mxu0 0.0
      %1003 = vmatpush2.msra.mxu0 0.0
      %1004 = vmatprep.subr.mxu0 0.0
      %1005 = vmatpush2.msra.mxu0 0.0
      %1006 = vmatprep.subr.mxu0 0.0
      %1007 = vmatpush2.msra.mxu0 0.0
      %1008 = vmatprep.subr.mxu0 0.0
      %1009 = vmatpush2.msra.mxu0 0.0
      %1010 = vmatprep.subr.mxu0 0.0
      %1011 = vmatpush2.msra.mxu0 0.0
      %1012 = vmatprep.subr.mxu0 0.0
      %1013 = vmatpush2.msra.mxu0 0.0
      %1014 = vmatprep.subr.mxu0 0.0
      %1015 = vmatpush2.msra.mxu0 0.0
      %1016 = vmatprep.mubr.f32.mxu0 0.0
      %1017 = vmatmul.mubr.f32.gmra.mxu0 %v950
      %v1018 = vpop.f32.mrf.mxu0
      %v1019 = vadd.f32 %v947, %v1018
      %v1020 = vpop.f32.mrf.mxu0
      %1021 = vdwg.mxu0
      %v1022 = vmax.f32 %v1019, 0.0
      %v1023 = vld [vmem:[%s314] sm:$0x1]
      %v1024 = vsub.f32 %v1022, %v1023
      %s1025 = scalar_lea.vmem %s6, 128
      %v1026 = vld [vmem:[%s1025] sm:$0xff]
      %v1027 = vld [vmem:[%s1025 + $0x8] sm:$0xff]
      %v1028 = vld [vmem:[%s1025 + $0x10] sm:$0xff]
      %v1029 = vld [vmem:[%s1025 + $0x18] sm:$0xff]
      %v1030 = vld [vmem:[%s1025 + $0x20] sm:$0xff]
      %v1031 = vld [vmem:[%s1025 + $0x28] sm:$0xff]
      %v1032 = vld [vmem:[%s1025 + $0x30] sm:$0xff]
      %v1033 = vld [vmem:[%s1025 + $0x38] sm:$0xff]
      %s1034 = scalar_lea.vmem %s6, 192
      %v1035 = vld [vmem:[%s1034] sm:$0xff]
      %v1036 = vld [vmem:[%s1034 + $0x8] sm:$0xff]
      %v1037 = vld [vmem:[%s1034 + $0x10] sm:$0xff]
      %v1038 = vld [vmem:[%s1034 + $0x18] sm:$0xff]
      %v1039 = vld [vmem:[%s1034 + $0x20] sm:$0xff]
      %v1040 = vld [vmem:[%s1034 + $0x28] sm:$0xff]
      %v1041 = vld [vmem:[%s1034 + $0x30] sm:$0xff]
      %v1042 = vld [vmem:[%s1034 + $0x38] sm:$0xff]
      %v1044 = vsel %vm862, %v1024, 0
      %1046 = vmatprep.subr.mxu0 0.0
      %1047 = vmatpush1.msra.mxu0 0.0
      %1048 = vmatprep.subr.mxu0 0.0
      %1049 = vmatpush1.msra.mxu0 0.0
      %1050 = vmatprep.subr.mxu0 0.0
      %1051 = vmatpush1.msra.mxu0 0.0
      %1052 = vmatprep.subr.mxu0 0.0
      %1053 = vmatpush1.msra.mxu0 0.0
      %1054 = vmatprep.subr.mxu0 0.0
      %1055 = vmatpush1.msra.mxu0 0.0
      %1056 = vmatprep.subr.mxu0 0.0
      %1057 = vmatpush1.msra.mxu0 0.0
      %1058 = vmatprep.subr.mxu0 0.0
      %1059 = vmatpush1.msra.mxu0 0.0
      %1060 = vmatprep.subr.mxu0 0.0
      %1061 = vmatpush1.msra.mxu0 0.0
      %1062 = vmatprep.subr.mxu0 0.0
      %1063 = vmatpush1.msra.mxu0 %v1042
      %1064 = vmatprep.subr.mxu0 0.0
      %1065 = vmatpush1.msra.mxu0 %v1041
      %1066 = vmatprep.subr.mxu0 0.0
      %1067 = vmatpush1.msra.mxu0 %v1040
      %1068 = vmatprep.subr.mxu0 0.0
      %1069 = vmatpush1.msra.mxu0 %v1039
      %1070 = vmatprep.subr.mxu0 0.0
      %1071 = vmatpush1.msra.mxu0 %v1038
      %1072 = vmatprep.subr.mxu0 0.0
      %1073 = vmatpush1.msra.mxu0 %v1037
      %1074 = vmatprep.subr.mxu0 0.0
      %1075 = vmatpush1.msra.mxu0 %v1036
      %1076 = vmatprep.subr.mxu0 0.0
      %1077 = vmatpush1.msra.mxu0 %v1035
      %1078 = vmatprep.subr.mxu0 0.0
      %1079 = vmatpush2.msra.mxu0 0.0
      %1080 = vmatprep.subr.mxu0 0.0
      %1081 = vmatpush2.msra.mxu0 0.0
      %1082 = vmatprep.subr.mxu0 0.0
      %1083 = vmatpush2.msra.mxu0 0.0
      %1084 = vmatprep.subr.mxu0 0.0
      %1085 = vmatpush2.msra.mxu0 0.0
      %1086 = vmatprep.subr.mxu0 0.0
      %1087 = vmatpush2.msra.mxu0 0.0
      %1088 = vmatprep.subr.mxu0 0.0
      %1089 = vmatpush2.msra.mxu0 0.0
      %1090 = vmatprep.subr.mxu0 0.0
      %1091 = vmatpush2.msra.mxu0 0.0
      %1092 = vmatprep.subr.mxu0 0.0
      %1093 = vmatpush2.msra.mxu0 0.0
      %1094 = vmatprep.subr.mxu0 0.0
      %1095 = vmatpush2.msra.mxu0 0.0
      %1096 = vmatprep.subr.mxu0 0.0
      %1097 = vmatpush2.msra.mxu0 0.0
      %1098 = vmatprep.subr.mxu0 0.0
      %1099 = vmatpush2.msra.mxu0 0.0
      %1100 = vmatprep.subr.mxu0 0.0
      %1101 = vmatpush2.msra.mxu0 0.0
      %1102 = vmatprep.subr.mxu0 0.0
      %1103 = vmatpush2.msra.mxu0 0.0
      %1104 = vmatprep.subr.mxu0 0.0
      %1105 = vmatpush2.msra.mxu0 0.0
      %1106 = vmatprep.subr.mxu0 0.0
      %1107 = vmatpush2.msra.mxu0 0.0
      %1108 = vmatprep.subr.mxu0 0.0
      %1109 = vmatpush2.msra.mxu0 0.0
      %1110 = vmatprep.mubr.f32.mxu0 0.0
      %1111 = vmatmul.mubr.f32.gmra.mxu0 %v1044
      %v1112 = vpop.f32.mrf.mxu0
      %v1113 = vadd.f32 0.0, %v1112
      %v1114 = vpop.f32.mrf.mxu0
      %1115 = vdwg.mxu0
      %1116 = vmatprep.subr.mxu0 0.0
      %1117 = vmatpush1.msra.mxu0 0.0
      %1118 = vmatprep.subr.mxu0 0.0
      %1119 = vmatpush1.msra.mxu0 0.0
      %1120 = vmatprep.subr.mxu0 0.0
      %1121 = vmatpush1.msra.mxu0 0.0
      %1122 = vmatprep.subr.mxu0 0.0
      %1123 = vmatpush1.msra.mxu0 0.0
      %1124 = vmatprep.subr.mxu0 0.0
      %1125 = vmatpush1.msra.mxu0 0.0
      %1126 = vmatprep.subr.mxu0 0.0
      %1127 = vmatpush1.msra.mxu0 0.0
      %1128 = vmatprep.subr.mxu0 0.0
      %1129 = vmatpush1.msra.mxu0 0.0
      %1130 = vmatprep.subr.mxu0 0.0
      %1131 = vmatpush1.msra.mxu0 0.0
      %1132 = vmatprep.subr.mxu0 0.0
      %1133 = vmatpush1.msra.mxu0 %v1033
      %1134 = vmatprep.subr.mxu0 0.0
      %1135 = vmatpush1.msra.mxu0 %v1032
      %1136 = vmatprep.subr.mxu0 0.0
      %1137 = vmatpush1.msra.mxu0 %v1031
      %1138 = vmatprep.subr.mxu0 0.0
      %1139 = vmatpush1.msra.mxu0 %v1030
      %1140 = vmatprep.subr.mxu0 0.0
      %1141 = vmatpush1.msra.mxu0 %v1029
      %1142 = vmatprep.subr.mxu0 0.0
      %1143 = vmatpush1.msra.mxu0 %v1028
      %1144 = vmatprep.subr.mxu0 0.0
      %1145 = vmatpush1.msra.mxu0 %v1027
      %1146 = vmatprep.subr.mxu0 0.0
      %1147 = vmatpush1.msra.mxu0 %v1026
      %1148 = vmatprep.subr.mxu0 0.0
      %1149 = vmatpush2.msra.mxu0 0.0
      %1150 = vmatprep.subr.mxu0 0.0
      %1151 = vmatpush2.msra.mxu0 0.0
      %1152 = vmatprep.subr.mxu0 0.0
      %1153 = vmatpush2.msra.mxu0 0.0
      %1154 = vmatprep.subr.mxu0 0.0
      %1155 = vmatpush2.msra.mxu0 0.0
      %1156 = vmatprep.subr.mxu0 0.0
      %1157 = vmatpush2.msra.mxu0 0.0
      %1158 = vmatprep.subr.mxu0 0.0
      %1159 = vmatpush2.msra.mxu0 0.0
      %1160 = vmatprep.subr.mxu0 0.0
      %1161 = vmatpush2.msra.mxu0 0.0
      %1162 = vmatprep.subr.mxu0 0.0
      %1163 = vmatpush2.msra.mxu0 0.0
      %1164 = vmatprep.subr.mxu0 0.0
      %1165 = vmatpush2.msra.mxu0 0.0
      %1166 = vmatprep.subr.mxu0 0.0
      %1167 = vmatpush2.msra.mxu0 0.0
      %1168 = vmatprep.subr.mxu0 0.0
      %1169 = vmatpush2.msra.mxu0 0.0
      %1170 = vmatprep.subr.mxu0 0.0
      %1171 = vmatpush2.msra.mxu0 0.0
      %1172 = vmatprep.subr.mxu0 0.0
      %1173 = vmatpush2.msra.mxu0 0.0
      %1174 = vmatprep.subr.mxu0 0.0
      %1175 = vmatpush2.msra.mxu0 0.0
      %1176 = vmatprep.subr.mxu0 0.0
      %1177 = vmatpush2.msra.mxu0 0.0
      %1178 = vmatprep.subr.mxu0 0.0
      %1179 = vmatpush2.msra.mxu0 0.0
      %1180 = vmatprep.mubr.f32.mxu0 0.0
      %1181 = vmatmul.mubr.f32.gmra.mxu0 %v864
      %v1182 = vpop.f32.mrf.mxu0
      %v1183 = vadd.f32 %v1113, %v1182
      %v1184 = vpop.f32.mrf.mxu0
      %1185 = vdwg.mxu0
      %v1186 = vrot.slane %v853, 2
      %v1188 = vadd.f32 %v1183, %v1186
      %v1189 = vmax.f32 %v1188, 0.0
      %s1190 = scalar_lea.vmem %s6, 256
      %v1191 = vld [vmem:[%s1190] sm:$0xff]
      %v1192 = vld [vmem:[%s1190 + $0x8] sm:$0xff]
      %v1193 = vld [vmem:[%s1190 + $0x10] sm:$0xff]
      %v1194 = vld [vmem:[%s1190 + $0x18] sm:$0xff]
      %v1195 = vld [vmem:[%s1190 + $0x20] sm:$0xff]
      %v1196 = vld [vmem:[%s1190 + $0x28] sm:$0xff]
      %v1197 = vld [vmem:[%s1190 + $0x30] sm:$0xff]
      %v1198 = vld [vmem:[%s1190 + $0x38] sm:$0xff]
      %v1199 = vrot.slane %v853, 3
      %v1202 = vsel %vm862, %v1189, 0
      %1204 = vmatprep.subr.mxu0 0.0
      %1205 = vmatpush1.msra.mxu0 0.0
      %1206 = vmatprep.subr.mxu0 0.0
      %1207 = vmatpush1.msra.mxu0 0.0
      %1208 = vmatprep.subr.mxu0 0.0
      %1209 = vmatpush1.msra.mxu0 0.0
      %1210 = vmatprep.subr.mxu0 0.0
      %1211 = vmatpush1.msra.mxu0 0.0
      %1212 = vmatprep.subr.mxu0 0.0
      %1213 = vmatpush1.msra.mxu0 0.0
      %1214 = vmatprep.subr.mxu0 0.0
      %1215 = vmatpush1.msra.mxu0 0.0
      %1216 = vmatprep.subr.mxu0 0.0
      %1217 = vmatpush1.msra.mxu0 0.0
      %1218 = vmatprep.subr.mxu0 0.0
      %1219 = vmatpush1.msra.mxu0 0.0
      %1220 = vmatprep.subr.mxu0 0.0
      %1221 = vmatpush1.msra.mxu0 %v1198
      %1222 = vmatprep.subr.mxu0 0.0
      %1223 = vmatpush1.msra.mxu0 %v1197
      %1224 = vmatprep.subr.mxu0 0.0
      %1225 = vmatpush1.msra.mxu0 %v1196
      %1226 = vmatprep.subr.mxu0 0.0
      %1227 = vmatpush1.msra.mxu0 %v1195
      %1228 = vmatprep.subr.mxu0 0.0
      %1229 = vmatpush1.msra.mxu0 %v1194
      %1230 = vmatprep.subr.mxu0 0.0
      %1231 = vmatpush1.msra.mxu0 %v1193
      %1232 = vmatprep.subr.mxu0 0.0
      %1233 = vmatpush1.msra.mxu0 %v1192
      %1234 = vmatprep.subr.mxu0 0.0
      %1235 = vmatpush1.msra.mxu0 %v1191
      %1236 = vmatprep.subr.mxu0 0.0
      %1237 = vmatpush2.msra.mxu0 0.0
      %1238 = vmatprep.subr.mxu0 0.0
      %1239 = vmatpush2.msra.mxu0 0.0
      %1240 = vmatprep.subr.mxu0 0.0
      %1241 = vmatpush2.msra.mxu0 0.0
      %1242 = vmatprep.subr.mxu0 0.0
      %1243 = vmatpush2.msra.mxu0 0.0
      %1244 = vmatprep.subr.mxu0 0.0
      %1245 = vmatpush2.msra.mxu0 0.0
      %1246 = vmatprep.subr.mxu0 0.0
      %1247 = vmatpush2.msra.mxu0 0.0
      %1248 = vmatprep.subr.mxu0 0.0
      %1249 = vmatpush2.msra.mxu0 0.0
      %1250 = vmatprep.subr.mxu0 0.0
      %1251 = vmatpush2.msra.mxu0 0.0
      %1252 = vmatprep.subr.mxu0 0.0
      %1253 = vmatpush2.msra.mxu0 0.0
      %1254 = vmatprep.subr.mxu0 0.0
      %1255 = vmatpush2.msra.mxu0 0.0
      %1256 = vmatprep.subr.mxu0 0.0
      %1257 = vmatpush2.msra.mxu0 0.0
      %1258 = vmatprep.subr.mxu0 0.0
      %1259 = vmatpush2.msra.mxu0 0.0
      %1260 = vmatprep.subr.mxu0 0.0
      %1261 = vmatpush2.msra.mxu0 0.0
      %1262 = vmatprep.subr.mxu0 0.0
      %1263 = vmatpush2.msra.mxu0 0.0
      %1264 = vmatprep.subr.mxu0 0.0
      %1265 = vmatpush2.msra.mxu0 0.0
      %1266 = vmatprep.subr.mxu0 0.0
      %1267 = vmatpush2.msra.mxu0 0.0
      %1268 = vmatprep.mubr.f32.mxu0 0.0
      %1269 = vmatmul.mubr.f32.gmra.mxu0 %v1202
      %v1270 = vpop.f32.mrf.mxu0
      %v1271 = vadd.f32 %v1199, %v1270
      %v1272 = vpop.f32.mrf.mxu0
      %1273 = vdwg.mxu0
      %v1274 = vmax.f32 %v1271, 0.0
      %1276 = vrot.lane.b32.xlu0 %v1274, 64
      %v1277 = vpop.permute.xlu0 %1276
      %v1279 = vsel %vm862, %v1022, %v1277
      %1280 = vst [vmem:[%s317] sm:$0x1] %v1279
      %p1281 = scmp.lt.s32.totalorder %s19, 1
      %s1282 = scalar_select %p1281, %s19, 1
      %s1283 = scalar_lea.vmem %s8, %s1282
      // Predicated region
      $region53: #{naive_eef_estimator_forward.1} parent=51 // pred_check
        %p1284 = pneg %p215
      $region54: #{naive_eef_estimator_forward.1} parent=51 // pred_check_branch
        %1286 = sbr.rel (%p1284) target = $region56
      $region55: #{naive_eef_estimator_forward.1} parent=51 // pred_region
        _
      $region56: #{naive_eef_estimator_forward.1} parent=51 // pred_fallthru
        _
    $region52: #{naive_eef_estimator_forward.1} parent=5 // pred_fallthru
      _
    %p1287 = scmp.le.s32.totalorder 2, %s14
    // Predicated region
    $region57: #{naive_eef_estimator_forward.1} parent=5 // pred_check
      %p1288 = pneg %p1287
    $region58: #{naive_eef_estimator_forward.1} parent=5 // pred_check_branch
      %1290 = sbr.rel (%p1288) target = $region60
    $region59: #{naive_eef_estimator_forward.1} parent=5 // pred_region
      %s1291 = ssub.s32 %s14, 2
      // Predicated region
      $region61: #{naive_eef_estimator_forward.1} parent=59 // pred_check
        %p1292 = pneg %p221
      $region62: #{naive_eef_estimator_forward.1} parent=59 // pred_check_branch
        %1294 = sbr.rel (%p1292) target = $region64
      $region63: #{naive_eef_estimator_forward.1} parent=59 // pred_region
        %p1295 = scmp.lt.s32.totalorder %s20, 1
        %s1296 = scalar_select %p1295, %s20, 1
        %s1297 = scalar_lea.vmem %s8, %s1296
      $region64: #{naive_eef_estimator_forward.1} parent=59 // pred_fallthru
        _
    $region60: #{naive_eef_estimator_forward.1} parent=5 // pred_fallthru
      _
  $region6: #{naive_eef_estimator_forward.1} parent=0 // loop_footer
    %s18 = sadd.s32 1, %s14
  $region7: #{naive_eef_estimator_forward.1} parent=0 // loop_footer_branch
    %13 = sbr.rel target = $region3
  $region8: #{naive_eef_estimator_forward.1} parent=0 // loop_exit
    _

</llo_original>
